<compile_context>
chip_gen: v7x
topology: tpu7x:2x2x1
jax: 0.10.0
libtpu: 0.0.40
codegen_flags: <defaults>
</compile_context>

<pallas_src>
import functools

import jax
import jax.numpy as jnp
from jax import lax
from jax.experimental import pallas as pl
from jax.experimental.pallas import tpu as pltpu


def _embed_ln_kernel(ids_ref, tok_hbm, pos_ref, gamma_ref, beta_ref, out_ref,
                     tok_buf, sem, *, T, Tsub, NSUB, S, eps):
    """One grid step = one (T, H) tile of tokens of sequence b.

    ids_ref:   (B*S,) int32 token ids in SMEM (scalar prefetch)
    tok_hbm:   (V, H) token-embedding table, left in HBM (pl.ANY)
    pos_ref:   (S, H) position-embedding table, resident in VMEM
    gamma_ref: (1, H) LayerNorm weight     beta_ref: (1, H) LayerNorm bias
    out_ref:   (T, H) output tile
    tok_buf:   (NSUB, Tsub, H) VMEM gather ring (sub-slots of the tile)
    sem:       (NSUB,) DMA semaphores, one per sub-slot
    """
    b = pl.program_id(0)
    j = pl.program_id(1)
    base = b * S + j * T

    # ---- Phase 1: queue every row-gather DMA for this tile up front. ------
    # Unrolled so SMEM id loads and DMA-descriptor pushes pipeline across the
    # two scalar slots.  (Issue before any wait: a .wait() breaks sst->sld
    # forwarding for the SMEM id reads.)
    for s in range(NSUB):                       # static Python loop
        sub_base = base + s * Tsub

        def issue(t, carry, s=s, sub_base=sub_base):
            row = ids_ref[sub_base + t]
            pltpu.make_async_copy(tok_hbm.at[row], tok_buf.at[s, t],
                                  sem.at[s]).start()
            return carry

        lax.fori_loop(0, Tsub, issue, 0, unroll=8)

    gamma = gamma_ref[...].astype(jnp.float32)  # (1, H), broadcasts
    beta = beta_ref[...].astype(jnp.float32)

    # ---- Phase 2: one aggregated wait per sub-slot, then LayerNorm it ----
    # while the later sub-slots' gathers are still in flight.
    for s in range(NSUB):
        # The DMA semaphore counts bytes: one wait sized (Tsub, H) consumes
        # exactly the Tsub per-row copies issued above for this sub-slot.
        pltpu.make_async_copy(tok_hbm.at[pl.ds(0, Tsub)], tok_buf.at[s],
                              sem.at[s]).wait()

        tok = tok_buf[s].astype(jnp.float32)                     # (Tsub, H)
        row0 = pl.multiple_of(j * T + s * Tsub, Tsub)
        pos = pos_ref[pl.ds(row0, Tsub), :].astype(jnp.float32)  # (Tsub, H)

        x = tok + pos
        mean = jnp.mean(x, axis=-1, keepdims=True)
        xc = x - mean
        var = jnp.mean(xc * xc, axis=-1, keepdims=True)
        y = xc * lax.rsqrt(var + eps) * gamma + beta
        out_ref[pl.ds(s * Tsub, Tsub), :] = y.astype(out_ref.dtype)


def _pick_tile(S_pad, H, tok_item, out_item, max_tile, budget=12 << 20):
    """Largest divisor of S_pad that is a multiple of 8, <= max_tile and whose
    per-tile footprint (gather scratch + double-buffered output) fits budget."""
    for cand in range(min(S_pad, max_tile), 7, -1):
        if (S_pad % cand == 0 and cand % 8 == 0
                and cand * H * (tok_item + 2 * out_item) <= budget):
            return cand
    return 8


def _pick_nsub(T):
    """Sub-slots per tile (deeper DMA ring => more gather/compute overlap)."""
    for n in (4, 2):
        if T % (8 * n) == 0:      # keep Tsub a sublane multiple
            return n
    return 1


def camembert_embedding(input_ids, tok_table, pos_table, gamma, beta, *,
                        eps=1e-12, max_tile=512, out_dtype=jnp.float32):
    """Pallas forward: LayerNorm(tok_emb[input_ids] + pos_emb[arange(S)])."""
    B, S = input_ids.shape
    V, H = tok_table.shape

    # Pad S up to a sublane multiple so every (T, H) block obeys the (8, 128)
    # block-shape rule; padded rows are computed on token id 0 and discarded.
    S_pad = ((S + 7) // 8) * 8
    ids = input_ids.astype(jnp.int32)
    if S_pad != S:
        ids = jnp.pad(ids, ((0, 0), (0, S_pad - S)))
    if pos_table.shape[0] < S_pad:
        pos_table = jnp.pad(pos_table,
                            ((0, S_pad - pos_table.shape[0]), (0, 0)))
    pos = pos_table[:S_pad]

    ids_flat = ids.reshape(-1)                       # (B*S_pad,) SMEM prefetch
    if ids_flat.size * 4 > 256 * 1024:
        # TODO(synk): tile the id array (per-sequence prefetch / VMEM staging)
        # instead of one flat SMEM array for very large B*S.
        raise ValueError("B*S too large for flat SMEM id prefetch; tile ids.")

    tok_item = jnp.dtype(tok_table.dtype).itemsize
    pos_item = jnp.dtype(pos.dtype).itemsize
    out_item = jnp.dtype(out_dtype).itemsize

    T = _pick_tile(S_pad, H, tok_item, out_item, max_tile)
    NSUB = _pick_nsub(T)
    Tsub = T // NSUB
    num_j = S_pad // T

    gamma2 = gamma.reshape(1, H)
    beta2 = beta.reshape(1, H)

    cost = pl.CostEstimate(
        flops=10 * B * S_pad * H,
        transcendentals=B * S_pad,
        bytes_accessed=(B * S_pad * H * (tok_item + out_item)
                        + S_pad * H * pos_item + B * S_pad * 4),
    )

    # Raise the scoped-VMEM limit only when the resident footprint needs it
    # (resident pos table + double-buffered output + gather ring); matters on
    # v5e's 16 MiB scoped default when H grows.
    vmem_needed = (2 * S_pad * H * pos_item
                   + 2 * T * H * out_item
                   + T * H * tok_item
                   + 16 * H + (1 << 20))
    vmem_limit = None
    if vmem_needed > 12 * 1024 * 1024:
        vmem_limit = min(max(2 * vmem_needed, 32 * 1024 * 1024),
                         64 * 1024 * 1024)

    kernel = functools.partial(_embed_ln_kernel, T=T, Tsub=Tsub, NSUB=NSUB,
                               S=S_pad, eps=eps)

    out = pl.pallas_call(
        kernel,
        out_shape=jax.ShapeDtypeStruct((B * S_pad, H), out_dtype),
        grid_spec=pltpu.PrefetchScalarGridSpec(
            num_scalar_prefetch=1,
            grid=(B, num_j),
            in_specs=[
                # Token-embedding table stays in HBM; gathered manually.
                pl.BlockSpec(memory_space=pl.ANY),
                # Position table: constant block index => DMA'd once, resident.
                pl.BlockSpec((S_pad, H), lambda b, j, ids: (0, 0)),
                # LayerNorm params: constant block (loaded once, resident).
                pl.BlockSpec((1, H), lambda b, j, ids: (0, 0)),
                pl.BlockSpec((1, H), lambda b, j, ids: (0, 0)),
            ],
            out_specs=pl.BlockSpec((T, H),
                                   lambda b, j, ids: (b * num_j + j, 0)),
            scratch_shapes=[
                pltpu.VMEM((NSUB, Tsub, H), tok_table.dtype),  # gather ring
                pltpu.SemaphoreType.DMA((NSUB,)),              # per sub-slot
            ],
        ),
        compiler_params=pltpu.CompilerParams(
            dimension_semantics=("parallel", "parallel"),
            vmem_limit_bytes=vmem_limit),
        cost_estimate=cost,
    )(ids_flat, tok_table, pos, gamma2, beta2)

    out = out.reshape(B, S_pad, H)
    if S_pad != S:
        out = out[:, :S, :]
    return out


def _reference(input_ids, tok_table, pos_table, gamma, beta, eps=1e-12):
    """Plain-JAX reference mirroring the PyTorch forward (eval mode)."""
    B, S = input_ids.shape
    w = jnp.take(tok_table, input_ids, axis=0).astype(jnp.float32)   # (B, S, H)
    p = pos_table[:S][None, :, :].astype(jnp.float32)                # (1, S, H)
    x = w + p
    mean = jnp.mean(x, axis=-1, keepdims=True)
    var = jnp.mean((x - mean) ** 2, axis=-1, keepdims=True)
    return (x - mean) / jnp.sqrt(var + eps) * gamma + beta


if __name__ == "__main__":
    # Small, deterministic synthetic config.
    vocab_size = 96
    max_position_embeddings = 40
    hidden_size = 128
    pad_token_id = 1
    layer_norm_eps = 1e-12
    B, S = 2, 32

    key = jax.random.PRNGKey(0)
    k_tok, k_pos, k_ids, k_g, k_b = jax.random.split(key, 5)

    # nn.Embedding default init ~ N(0, 1); padding_idx row is zeroed.
    tok_table = jax.random.normal(k_tok, (vocab_size, hidden_size), jnp.float32)
    tok_table = tok_table.at[pad_token_id].set(0.0)
    pos_table = jax.random.normal(
        k_pos, (max_position_embeddings, hidden_size), jnp.float32)
    gamma = 1.0 + 0.1 * jax.random.normal(k_g, (hidden_size,), jnp.float32)
    beta = 0.05 * jax.random.normal(k_b, (hidden_size,), jnp.float32)

    input_ids = jax.random.randint(k_ids, (B, S), 0, vocab_size, jnp.int32)
    input_ids = input_ids.at[0, -1].set(pad_token_id)   # exercise zeroed row

    ref = _reference(input_ids, tok_table, pos_table, gamma, beta,
                     eps=layer_norm_eps)

    # 1) Default tiling: T = 32, NSUB = 4 sub-slots per tile.
    out_big = camembert_embedding(input_ids, tok_table, pos_table, gamma, beta,
                                  eps=layer_norm_eps)
    out_big = jax.block_until_ready(out_big)
    assert out_big.shape == (B, S, hidden_size)
    assert jnp.allclose(out_big, ref, atol=1e-5, rtol=1e-5)

    # 2) Forced small tile (T = 8 -> 4 tiles/sequence, single sub-slot path).
    out_small = camembert_embedding(input_ids, tok_table, pos_table, gamma,
                                    beta, eps=layer_norm_eps, max_tile=8)
    out_small = jax.block_until_ready(out_small)
    assert jnp.allclose(out_small, ref, atol=1e-5, rtol=1e-5)

    # 3) bf16 embedding tables (halves gather bytes on v5e/v6e); LN math f32.
    tok_bf16 = tok_table.astype(jnp.bfloat16)
    pos_bf16 = pos_table.astype(jnp.bfloat16)
    ref_bf16 = _reference(input_ids, tok_bf16.astype(jnp.float32),
                          pos_bf16.astype(jnp.float32), gamma, beta,
                          eps=layer_norm_eps)
    out_bf16 = camembert_embedding(input_ids, tok_bf16, pos_bf16, gamma, beta,
                                   eps=layer_norm_eps)
    out_bf16 = jax.block_until_ready(out_bf16)
    assert jnp.allclose(out_bf16, ref_bf16, atol=1e-4, rtol=1e-4)

    # 4) Odd sequence length (padded internally to a sublane multiple).
    S_odd = 30
    ids_odd = input_ids[:, :S_odd]
    ref_odd = _reference(ids_odd, tok_table, pos_table, gamma, beta,
                         eps=layer_norm_eps)
    out_odd = camembert_embedding(ids_odd, tok_table, pos_table, gamma, beta,
                                  eps=layer_norm_eps)
    out_odd = jax.block_until_ready(out_odd)
    assert out_odd.shape == (B, S_odd, hidden_size)
    assert jnp.allclose(out_odd, ref_odd, atol=1e-5, rtol=1e-5)

    print("KERNEL_OK")
</pallas_src>

<mosaic_0001>
module attributes {stable_mosaic.version = 11 : i64} {
  func.func @_embed_ln_kernel(%arg0: i32, %arg1: i32, %arg2: memref<64xi32, #tpu.memory_space<smem>>, %arg3: memref<96x128xf32, #tpu.memory_space<any>>, %arg4: memref<32x128xf32, #tpu.memory_space<vmem>>, %arg5: memref<1x128xf32, #tpu.memory_space<vmem>>, %arg6: memref<1x128xf32, #tpu.memory_space<vmem>>, %arg7: memref<32x128xf32, #tpu.memory_space<vmem>>, %arg8: memref<4x8x128xf32, #tpu.memory_space<vmem>>, %arg9: memref<4x!tpu.dma_semaphore, #tpu.memory_space<semaphore_mem>>) attributes {dimension_semantics = [#tpu.dimension_semantics<parallel>, #tpu.dimension_semantics<parallel>], iteration_bounds = array<i64: 2, 1>, scalar_prefetch = 1 : i64, scratch_operands = 2 : i64, tpu.core_type = #tpu.core_type<tc>, window_params = [{}, {pipeline_mode = #tpu.pipeline_mode<synchronous>, transform_indices = @transform_1, window_bounds = array<i64: 32, 128>}, {pipeline_mode = #tpu.pipeline_mode<synchronous>, transform_indices = @transform_2, window_bounds = array<i64: 1, 128>}, {pipeline_mode = #tpu.pipeline_mode<synchronous>, transform_indices = @transform_3, window_bounds = array<i64: 1, 128>}, {transform_indices = @transform_4, window_bounds = array<i64: 32, 128>}]} {
    %c32_i32 = arith.constant 32 : i32
    %0 = arith.muli %arg0, %c32_i32 : i32
    %c32_i32_0 = arith.constant 32 : i32
    %1 = arith.muli %arg1, %c32_i32_0 : i32
    %2 = arith.addi %0, %1 : i32
    %c0_i32 = arith.constant 0 : i32
    %3 = arith.addi %2, %c0_i32 : i32
    %c0_i32_1 = arith.constant 0 : i32
    %4 = arith.addi %3, %c0_i32_1 : i32
    %5 = arith.index_cast %4 : i32 to index
    %6 = memref.load %arg2[%5] : memref<64xi32, #tpu.memory_space<smem>>
    %c0_i32_2 = arith.constant 0 : i32
    %c0_i32_3 = arith.constant 0 : i32
    %c0_i32_4 = arith.constant 0 : i32
    %7 = tpu.memref_slice %arg3[%6, %c0_i32_4] : memref<96x128xf32, #tpu.memory_space<any>> -> memref<1x128xf32, #tpu.memory_space<any>>
    %8 = tpu.memref_squeeze %7 : memref<1x128xf32, #tpu.memory_space<any>> -> memref<128xf32, #tpu.memory_space<any>>
    %c0_i32_5 = arith.constant 0 : i32
    %9 = tpu.memref_slice %arg8[%c0_i32_2, %c0_i32_1, %c0_i32_5] : memref<4x8x128xf32, #tpu.memory_space<vmem>> -> memref<1x1x128xf32, #tpu.memory_space<vmem>>
    %10 = tpu.memref_squeeze %9 : memref<1x1x128xf32, #tpu.memory_space<vmem>> -> memref<128xf32, #tpu.memory_space<vmem>>
    %11 = tpu.memref_slice %arg9[%c0_i32_3] : memref<4x!tpu.dma_semaphore, #tpu.memory_space<semaphore_mem>> -> memref<1x!tpu.dma_semaphore, #tpu.memory_space<semaphore_mem>>
    %12 = tpu.memref_squeeze %11 : memref<1x!tpu.dma_semaphore, #tpu.memory_space<semaphore_mem>> -> memref<!tpu.dma_semaphore, #tpu.memory_space<semaphore_mem>>
    tpu.enqueue_dma source(%8 : memref<128xf32, #tpu.memory_space<any>>) target(%10 : memref<128xf32, #tpu.memory_space<vmem>>) target_semaphore(%12 : memref<!tpu.dma_semaphore, #tpu.memory_space<semaphore_mem>>)
    %c1_i32 = arith.constant 1 : i32
    %13 = arith.addi %3, %c1_i32 : i32
    %14 = arith.index_cast %13 : i32 to index
    %15 = memref.load %arg2[%14] : memref<64xi32, #tpu.memory_space<smem>>
    %c0_i32_6 = arith.constant 0 : i32
    %c0_i32_7 = arith.constant 0 : i32
    %c0_i32_8 = arith.constant 0 : i32
    %16 = tpu.memref_slice %arg3[%15, %c0_i32_8] : memref<96x128xf32, #tpu.memory_space<any>> -> memref<1x128xf32, #tpu.memory_space<any>>
    %17 = tpu.memref_squeeze %16 : memref<1x128xf32, #tpu.memory_space<any>> -> memref<128xf32, #tpu.memory_space<any>>
    %c0_i32_9 = arith.constant 0 : i32
    %18 = tpu.memref_slice %arg8[%c0_i32_6, %c1_i32, %c0_i32_9] : memref<4x8x128xf32, #tpu.memory_space<vmem>> -> memref<1x1x128xf32, #tpu.memory_space<vmem>>
    %19 = tpu.memref_squeeze %18 : memref<1x1x128xf32, #tpu.memory_space<vmem>> -> memref<128xf32, #tpu.memory_space<vmem>>
    %20 = tpu.memref_slice %arg9[%c0_i32_7] : memref<4x!tpu.dma_semaphore, #tpu.memory_space<semaphore_mem>> -> memref<1x!tpu.dma_semaphore, #tpu.memory_space<semaphore_mem>>
    %21 = tpu.memref_squeeze %20 : memref<1x!tpu.dma_semaphore, #tpu.memory_space<semaphore_mem>> -> memref<!tpu.dma_semaphore, #tpu.memory_space<semaphore_mem>>
    tpu.enqueue_dma source(%17 : memref<128xf32, #tpu.memory_space<any>>) target(%19 : memref<128xf32, #tpu.memory_space<vmem>>) target_semaphore(%21 : memref<!tpu.dma_semaphore, #tpu.memory_space<semaphore_mem>>)
    %c2_i32 = arith.constant 2 : i32
    %22 = arith.addi %3, %c2_i32 : i32
    %23 = arith.index_cast %22 : i32 to index
    %24 = memref.load %arg2[%23] : memref<64xi32, #tpu.memory_space<smem>>
    %c0_i32_10 = arith.constant 0 : i32
    %c0_i32_11 = arith.constant 0 : i32
    %c0_i32_12 = arith.constant 0 : i32
    %25 = tpu.memref_slice %arg3[%24, %c0_i32_12] : memref<96x128xf32, #tpu.memory_space<any>> -> memref<1x128xf32, #tpu.memory_space<any>>
    %26 = tpu.memref_squeeze %25 : memref<1x128xf32, #tpu.memory_space<any>> -> memref<128xf32, #tpu.memory_space<any>>
    %c0_i32_13 = arith.constant 0 : i32
    %27 = tpu.memref_slice %arg8[%c0_i32_10, %c2_i32, %c0_i32_13] : memref<4x8x128xf32, #tpu.memory_space<vmem>> -> memref<1x1x128xf32, #tpu.memory_space<vmem>>
    %28 = tpu.memref_squeeze %27 : memref<1x1x128xf32, #tpu.memory_space<vmem>> -> memref<128xf32, #tpu.memory_space<vmem>>
    %29 = tpu.memref_slice %arg9[%c0_i32_11] : memref<4x!tpu.dma_semaphore, #tpu.memory_space<semaphore_mem>> -> memref<1x!tpu.dma_semaphore, #tpu.memory_space<semaphore_mem>>
    %30 = tpu.memref_squeeze %29 : memref<1x!tpu.dma_semaphore, #tpu.memory_space<semaphore_mem>> -> memref<!tpu.dma_semaphore, #tpu.memory_space<semaphore_mem>>
    tpu.enqueue_dma source(%26 : memref<128xf32, #tpu.memory_space<any>>) target(%28 : memref<128xf32, #tpu.memory_space<vmem>>) target_semaphore(%30 : memref<!tpu.dma_semaphore, #tpu.memory_space<semaphore_mem>>)
    %c3_i32 = arith.constant 3 : i32
    %31 = arith.addi %3, %c3_i32 : i32
    %32 = arith.index_cast %31 : i32 to index
    %33 = memref.load %arg2[%32] : memref<64xi32, #tpu.memory_space<smem>>
    %c0_i32_14 = arith.constant 0 : i32
    %c0_i32_15 = arith.constant 0 : i32
    %c0_i32_16 = arith.constant 0 : i32
    %34 = tpu.memref_slice %arg3[%33, %c0_i32_16] : memref<96x128xf32, #tpu.memory_space<any>> -> memref<1x128xf32, #tpu.memory_space<any>>
    %35 = tpu.memref_squeeze %34 : memref<1x128xf32, #tpu.memory_space<any>> -> memref<128xf32, #tpu.memory_space<any>>
    %c0_i32_17 = arith.constant 0 : i32
    %36 = tpu.memref_slice %arg8[%c0_i32_14, %c3_i32, %c0_i32_17] : memref<4x8x128xf32, #tpu.memory_space<vmem>> -> memref<1x1x128xf32, #tpu.memory_space<vmem>>
    %37 = tpu.memref_squeeze %36 : memref<1x1x128xf32, #tpu.memory_space<vmem>> -> memref<128xf32, #tpu.memory_space<vmem>>
    %38 = tpu.memref_slice %arg9[%c0_i32_15] : memref<4x!tpu.dma_semaphore, #tpu.memory_space<semaphore_mem>> -> memref<1x!tpu.dma_semaphore, #tpu.memory_space<semaphore_mem>>
    %39 = tpu.memref_squeeze %38 : memref<1x!tpu.dma_semaphore, #tpu.memory_space<semaphore_mem>> -> memref<!tpu.dma_semaphore, #tpu.memory_space<semaphore_mem>>
    tpu.enqueue_dma source(%35 : memref<128xf32, #tpu.memory_space<any>>) target(%37 : memref<128xf32, #tpu.memory_space<vmem>>) target_semaphore(%39 : memref<!tpu.dma_semaphore, #tpu.memory_space<semaphore_mem>>)
    %c4_i32 = arith.constant 4 : i32
    %40 = arith.addi %3, %c4_i32 : i32
    %41 = arith.index_cast %40 : i32 to index
    %42 = memref.load %arg2[%41] : memref<64xi32, #tpu.memory_space<smem>>
    %c0_i32_18 = arith.constant 0 : i32
    %c0_i32_19 = arith.constant 0 : i32
    %c0_i32_20 = arith.constant 0 : i32
    %43 = tpu.memref_slice %arg3[%42, %c0_i32_20] : memref<96x128xf32, #tpu.memory_space<any>> -> memref<1x128xf32, #tpu.memory_space<any>>
    %44 = tpu.memref_squeeze %43 : memref<1x128xf32, #tpu.memory_space<any>> -> memref<128xf32, #tpu.memory_space<any>>
    %c0_i32_21 = arith.constant 0 : i32
    %45 = tpu.memref_slice %arg8[%c0_i32_18, %c4_i32, %c0_i32_21] : memref<4x8x128xf32, #tpu.memory_space<vmem>> -> memref<1x1x128xf32, #tpu.memory_space<vmem>>
    %46 = tpu.memref_squeeze %45 : memref<1x1x128xf32, #tpu.memory_space<vmem>> -> memref<128xf32, #tpu.memory_space<vmem>>
    %47 = tpu.memref_slice %arg9[%c0_i32_19] : memref<4x!tpu.dma_semaphore, #tpu.memory_space<semaphore_mem>> -> memref<1x!tpu.dma_semaphore, #tpu.memory_space<semaphore_mem>>
    %48 = tpu.memref_squeeze %47 : memref<1x!tpu.dma_semaphore, #tpu.memory_space<semaphore_mem>> -> memref<!tpu.dma_semaphore, #tpu.memory_space<semaphore_mem>>
    tpu.enqueue_dma source(%44 : memref<128xf32, #tpu.memory_space<any>>) target(%46 : memref<128xf32, #tpu.memory_space<vmem>>) target_semaphore(%48 : memref<!tpu.dma_semaphore, #tpu.memory_space<semaphore_mem>>)
    %c5_i32 = arith.constant 5 : i32
    %49 = arith.addi %3, %c5_i32 : i32
    %50 = arith.index_cast %49 : i32 to index
    %51 = memref.load %arg2[%50] : memref<64xi32, #tpu.memory_space<smem>>
    %c0_i32_22 = arith.constant 0 : i32
    %c0_i32_23 = arith.constant 0 : i32
    %c0_i32_24 = arith.constant 0 : i32
    %52 = tpu.memref_slice %arg3[%51, %c0_i32_24] : memref<96x128xf32, #tpu.memory_space<any>> -> memref<1x128xf32, #tpu.memory_space<any>>
    %53 = tpu.memref_squeeze %52 : memref<1x128xf32, #tpu.memory_space<any>> -> memref<128xf32, #tpu.memory_space<any>>
    %c0_i32_25 = arith.constant 0 : i32
    %54 = tpu.memref_slice %arg8[%c0_i32_22, %c5_i32, %c0_i32_25] : memref<4x8x128xf32, #tpu.memory_space<vmem>> -> memref<1x1x128xf32, #tpu.memory_space<vmem>>
    %55 = tpu.memref_squeeze %54 : memref<1x1x128xf32, #tpu.memory_space<vmem>> -> memref<128xf32, #tpu.memory_space<vmem>>
    %56 = tpu.memref_slice %arg9[%c0_i32_23] : memref<4x!tpu.dma_semaphore, #tpu.memory_space<semaphore_mem>> -> memref<1x!tpu.dma_semaphore, #tpu.memory_space<semaphore_mem>>
    %57 = tpu.memref_squeeze %56 : memref<1x!tpu.dma_semaphore, #tpu.memory_space<semaphore_mem>> -> memref<!tpu.dma_semaphore, #tpu.memory_space<semaphore_mem>>
    tpu.enqueue_dma source(%53 : memref<128xf32, #tpu.memory_space<any>>) target(%55 : memref<128xf32, #tpu.memory_space<vmem>>) target_semaphore(%57 : memref<!tpu.dma_semaphore, #tpu.memory_space<semaphore_mem>>)
    %c6_i32 = arith.constant 6 : i32
    %58 = arith.addi %3, %c6_i32 : i32
    %59 = arith.index_cast %58 : i32 to index
    %60 = memref.load %arg2[%59] : memref<64xi32, #tpu.memory_space<smem>>
    %c0_i32_26 = arith.constant 0 : i32
    %c0_i32_27 = arith.constant 0 : i32
    %c0_i32_28 = arith.constant 0 : i32
    %61 = tpu.memref_slice %arg3[%60, %c0_i32_28] : memref<96x128xf32, #tpu.memory_space<any>> -> memref<1x128xf32, #tpu.memory_space<any>>
    %62 = tpu.memref_squeeze %61 : memref<1x128xf32, #tpu.memory_space<any>> -> memref<128xf32, #tpu.memory_space<any>>
    %c0_i32_29 = arith.constant 0 : i32
    %63 = tpu.memref_slice %arg8[%c0_i32_26, %c6_i32, %c0_i32_29] : memref<4x8x128xf32, #tpu.memory_space<vmem>> -> memref<1x1x128xf32, #tpu.memory_space<vmem>>
    %64 = tpu.memref_squeeze %63 : memref<1x1x128xf32, #tpu.memory_space<vmem>> -> memref<128xf32, #tpu.memory_space<vmem>>
    %65 = tpu.memref_slice %arg9[%c0_i32_27] : memref<4x!tpu.dma_semaphore, #tpu.memory_space<semaphore_mem>> -> memref<1x!tpu.dma_semaphore, #tpu.memory_space<semaphore_mem>>
    %66 = tpu.memref_squeeze %65 : memref<1x!tpu.dma_semaphore, #tpu.memory_space<semaphore_mem>> -> memref<!tpu.dma_semaphore, #tpu.memory_space<semaphore_mem>>
    tpu.enqueue_dma source(%62 : memref<128xf32, #tpu.memory_space<any>>) target(%64 : memref<128xf32, #tpu.memory_space<vmem>>) target_semaphore(%66 : memref<!tpu.dma_semaphore, #tpu.memory_space<semaphore_mem>>)
    %c7_i32 = arith.constant 7 : i32
    %67 = arith.addi %3, %c7_i32 : i32
    %68 = arith.index_cast %67 : i32 to index
    %69 = memref.load %arg2[%68] : memref<64xi32, #tpu.memory_space<smem>>
    %c0_i32_30 = arith.constant 0 : i32
    %c0_i32_31 = arith.constant 0 : i32
    %c0_i32_32 = arith.constant 0 : i32
    %70 = tpu.memref_slice %arg3[%69, %c0_i32_32] : memref<96x128xf32, #tpu.memory_space<any>> -> memref<1x128xf32, #tpu.memory_space<any>>
    %71 = tpu.memref_squeeze %70 : memref<1x128xf32, #tpu.memory_space<any>> -> memref<128xf32, #tpu.memory_space<any>>
    %c0_i32_33 = arith.constant 0 : i32
    %72 = tpu.memref_slice %arg8[%c0_i32_30, %c7_i32, %c0_i32_33] : memref<4x8x128xf32, #tpu.memory_space<vmem>> -> memref<1x1x128xf32, #tpu.memory_space<vmem>>
    %73 = tpu.memref_squeeze %72 : memref<1x1x128xf32, #tpu.memory_space<vmem>> -> memref<128xf32, #tpu.memory_space<vmem>>
    %74 = tpu.memref_slice %arg9[%c0_i32_31] : memref<4x!tpu.dma_semaphore, #tpu.memory_space<semaphore_mem>> -> memref<1x!tpu.dma_semaphore, #tpu.memory_space<semaphore_mem>>
    %75 = tpu.memref_squeeze %74 : memref<1x!tpu.dma_semaphore, #tpu.memory_space<semaphore_mem>> -> memref<!tpu.dma_semaphore, #tpu.memory_space<semaphore_mem>>
    tpu.enqueue_dma source(%71 : memref<128xf32, #tpu.memory_space<any>>) target(%73 : memref<128xf32, #tpu.memory_space<vmem>>) target_semaphore(%75 : memref<!tpu.dma_semaphore, #tpu.memory_space<semaphore_mem>>)
    %c8_i32 = arith.constant 8 : i32
    %c8_i32_34 = arith.constant 8 : i32
    %76 = arith.addi %2, %c8_i32_34 : i32
    %c0_i32_35 = arith.constant 0 : i32
    %77 = arith.addi %76, %c0_i32_35 : i32
    %78 = arith.index_cast %77 : i32 to index
    %79 = memref.load %arg2[%78] : memref<64xi32, #tpu.memory_space<smem>>
    %c1_i32_36 = arith.constant 1 : i32
    %c1_i32_37 = arith.constant 1 : i32
    %c0_i32_38 = arith.constant 0 : i32
    %80 = tpu.memref_slice %arg3[%79, %c0_i32_38] : memref<96x128xf32, #tpu.memory_space<any>> -> memref<1x128xf32, #tpu.memory_space<any>>
    %81 = tpu.memref_squeeze %80 : memref<1x128xf32, #tpu.memory_space<any>> -> memref<128xf32, #tpu.memory_space<any>>
    %c0_i32_39 = arith.constant 0 : i32
    %82 = tpu.memref_slice %arg8[%c1_i32_36, %c0_i32_35, %c0_i32_39] : memref<4x8x128xf32, #tpu.memory_space<vmem>> -> memref<1x1x128xf32, #tpu.memory_space<vmem>>
    %83 = tpu.memref_squeeze %82 : memref<1x1x128xf32, #tpu.memory_space<vmem>> -> memref<128xf32, #tpu.memory_space<vmem>>
    %84 = tpu.memref_slice %arg9[%c1_i32_37] : memref<4x!tpu.dma_semaphore, #tpu.memory_space<semaphore_mem>> -> memref<1x!tpu.dma_semaphore, #tpu.memory_space<semaphore_mem>>
    %85 = tpu.memref_squeeze %84 : memref<1x!tpu.dma_semaphore, #tpu.memory_space<semaphore_mem>> -> memref<!tpu.dma_semaphore, #tpu.memory_space<semaphore_mem>>
    tpu.enqueue_dma source(%81 : memref<128xf32, #tpu.memory_space<any>>) target(%83 : memref<128xf32, #tpu.memory_space<vmem>>) target_semaphore(%85 : memref<!tpu.dma_semaphore, #tpu.memory_space<semaphore_mem>>)
    %c1_i32_40 = arith.constant 1 : i32
    %86 = arith.addi %76, %c1_i32_40 : i32
    %87 = arith.index_cast %86 : i32 to index
    %88 = memref.load %arg2[%87] : memref<64xi32, #tpu.memory_space<smem>>
    %c1_i32_41 = arith.constant 1 : i32
    %c1_i32_42 = arith.constant 1 : i32
    %c0_i32_43 = arith.constant 0 : i32
    %89 = tpu.memref_slice %arg3[%88, %c0_i32_43] : memref<96x128xf32, #tpu.memory_space<any>> -> memref<1x128xf32, #tpu.memory_space<any>>
    %90 = tpu.memref_squeeze %89 : memref<1x128xf32, #tpu.memory_space<any>> -> memref<128xf32, #tpu.memory_space<any>>
    %c0_i32_44 = arith.constant 0 : i32
    %91 = tpu.memref_slice %arg8[%c1_i32_41, %c1_i32_40, %c0_i32_44] : memref<4x8x128xf32, #tpu.memory_space<vmem>> -> memref<1x1x128xf32, #tpu.memory_space<vmem>>
    %92 = tpu.memref_squeeze %91 : memref<1x1x128xf32, #tpu.memory_space<vmem>> -> memref<128xf32, #tpu.memory_space<vmem>>
    %93 = tpu.memref_slice %arg9[%c1_i32_42] : memref<4x!tpu.dma_semaphore, #tpu.memory_space<semaphore_mem>> -> memref<1x!tpu.dma_semaphore, #tpu.memory_space<semaphore_mem>>
    %94 = tpu.memref_squeeze %93 : memref<1x!tpu.dma_semaphore, #tpu.memory_space<semaphore_mem>> -> memref<!tpu.dma_semaphore, #tpu.memory_space<semaphore_mem>>
    tpu.enqueue_dma source(%90 : memref<128xf32, #tpu.memory_space<any>>) target(%92 : memref<128xf32, #tpu.memory_space<vmem>>) target_semaphore(%94 : memref<!tpu.dma_semaphore, #tpu.memory_space<semaphore_mem>>)
    %c2_i32_45 = arith.constant 2 : i32
    %95 = arith.addi %76, %c2_i32_45 : i32
    %96 = arith.index_cast %95 : i32 to index
    %97 = memref.load %arg2[%96] : memref<64xi32, #tpu.memory_space<smem>>
    %c1_i32_46 = arith.constant 1 : i32
    %c1_i32_47 = arith.constant 1 : i32
    %c0_i32_48 = arith.constant 0 : i32
    %98 = tpu.memref_slice %arg3[%97, %c0_i32_48] : memref<96x128xf32, #tpu.memory_space<any>> -> memref<1x128xf32, #tpu.memory_space<any>>
    %99 = tpu.memref_squeeze %98 : memref<1x128xf32, #tpu.memory_space<any>> -> memref<128xf32, #tpu.memory_space<any>>
    %c0_i32_49 = arith.constant 0 : i32
    %100 = tpu.memref_slice %arg8[%c1_i32_46, %c2_i32_45, %c0_i32_49] : memref<4x8x128xf32, #tpu.memory_space<vmem>> -> memref<1x1x128xf32, #tpu.memory_space<vmem>>
    %101 = tpu.memref_squeeze %100 : memref<1x1x128xf32, #tpu.memory_space<vmem>> -> memref<128xf32, #tpu.memory_space<vmem>>
    %102 = tpu.memref_slice %arg9[%c1_i32_47] : memref<4x!tpu.dma_semaphore, #tpu.memory_space<semaphore_mem>> -> memref<1x!tpu.dma_semaphore, #tpu.memory_space<semaphore_mem>>
    %103 = tpu.memref_squeeze %102 : memref<1x!tpu.dma_semaphore, #tpu.memory_space<semaphore_mem>> -> memref<!tpu.dma_semaphore, #tpu.memory_space<semaphore_mem>>
    tpu.enqueue_dma source(%99 : memref<128xf32, #tpu.memory_space<any>>) target(%101 : memref<128xf32, #tpu.memory_space<vmem>>) target_semaphore(%103 : memref<!tpu.dma_semaphore, #tpu.memory_space<semaphore_mem>>)
    %c3_i32_50 = arith.constant 3 : i32
    %104 = arith.addi %76, %c3_i32_50 : i32
    %105 = arith.index_cast %104 : i32 to index
    %106 = memref.load %arg2[%105] : memref<64xi32, #tpu.memory_space<smem>>
    %c1_i32_51 = arith.constant 1 : i32
    %c1_i32_52 = arith.constant 1 : i32
    %c0_i32_53 = arith.constant 0 : i32
    %107 = tpu.memref_slice %arg3[%106, %c0_i32_53] : memref<96x128xf32, #tpu.memory_space<any>> -> memref<1x128xf32, #tpu.memory_space<any>>
    %108 = tpu.memref_squeeze %107 : memref<1x128xf32, #tpu.memory_space<any>> -> memref<128xf32, #tpu.memory_space<any>>
    %c0_i32_54 = arith.constant 0 : i32
    %109 = tpu.memref_slice %arg8[%c1_i32_51, %c3_i32_50, %c0_i32_54] : memref<4x8x128xf32, #tpu.memory_space<vmem>> -> memref<1x1x128xf32, #tpu.memory_space<vmem>>
    %110 = tpu.memref_squeeze %109 : memref<1x1x128xf32, #tpu.memory_space<vmem>> -> memref<128xf32, #tpu.memory_space<vmem>>
    %111 = tpu.memref_slice %arg9[%c1_i32_52] : memref<4x!tpu.dma_semaphore, #tpu.memory_space<semaphore_mem>> -> memref<1x!tpu.dma_semaphore, #tpu.memory_space<semaphore_mem>>
    %112 = tpu.memref_squeeze %111 : memref<1x!tpu.dma_semaphore, #tpu.memory_space<semaphore_mem>> -> memref<!tpu.dma_semaphore, #tpu.memory_space<semaphore_mem>>
    tpu.enqueue_dma source(%108 : memref<128xf32, #tpu.memory_space<any>>) target(%110 : memref<128xf32, #tpu.memory_space<vmem>>) target_semaphore(%112 : memref<!tpu.dma_semaphore, #tpu.memory_space<semaphore_mem>>)
    %c4_i32_55 = arith.constant 4 : i32
    %113 = arith.addi %76, %c4_i32_55 : i32
    %114 = arith.index_cast %113 : i32 to index
    %115 = memref.load %arg2[%114] : memref<64xi32, #tpu.memory_space<smem>>
    %c1_i32_56 = arith.constant 1 : i32
    %c1_i32_57 = arith.constant 1 : i32
    %c0_i32_58 = arith.constant 0 : i32
    %116 = tpu.memref_slice %arg3[%115, %c0_i32_58] : memref<96x128xf32, #tpu.memory_space<any>> -> memref<1x128xf32, #tpu.memory_space<any>>
    %117 = tpu.memref_squeeze %116 : memref<1x128xf32, #tpu.memory_space<any>> -> memref<128xf32, #tpu.memory_space<any>>
    %c0_i32_59 = arith.constant 0 : i32
    %118 = tpu.memref_slice %arg8[%c1_i32_56, %c4_i32_55, %c0_i32_59] : memref<4x8x128xf32, #tpu.memory_space<vmem>> -> memref<1x1x128xf32, #tpu.memory_space<vmem>>
    %119 = tpu.memref_squeeze %118 : memref<1x1x128xf32, #tpu.memory_space<vmem>> -> memref<128xf32, #tpu.memory_space<vmem>>
    %120 = tpu.memref_slice %arg9[%c1_i32_57] : memref<4x!tpu.dma_semaphore, #tpu.memory_space<semaphore_mem>> -> memref<1x!tpu.dma_semaphore, #tpu.memory_space<semaphore_mem>>
    %121 = tpu.memref_squeeze %120 : memref<1x!tpu.dma_semaphore, #tpu.memory_space<semaphore_mem>> -> memref<!tpu.dma_semaphore, #tpu.memory_space<semaphore_mem>>
    tpu.enqueue_dma source(%117 : memref<128xf32, #tpu.memory_space<any>>) target(%119 : memref<128xf32, #tpu.memory_space<vmem>>) target_semaphore(%121 : memref<!tpu.dma_semaphore, #tpu.memory_space<semaphore_mem>>)
    %c5_i32_60 = arith.constant 5 : i32
    %122 = arith.addi %76, %c5_i32_60 : i32
    %123 = arith.index_cast %122 : i32 to index
    %124 = memref.load %arg2[%123] : memref<64xi32, #tpu.memory_space<smem>>
    %c1_i32_61 = arith.constant 1 : i32
    %c1_i32_62 = arith.constant 1 : i32
    %c0_i32_63 = arith.constant 0 : i32
    %125 = tpu.memref_slice %arg3[%124, %c0_i32_63] : memref<96x128xf32, #tpu.memory_space<any>> -> memref<1x128xf32, #tpu.memory_space<any>>
    %126 = tpu.memref_squeeze %125 : memref<1x128xf32, #tpu.memory_space<any>> -> memref<128xf32, #tpu.memory_space<any>>
    %c0_i32_64 = arith.constant 0 : i32
    %127 = tpu.memref_slice %arg8[%c1_i32_61, %c5_i32_60, %c0_i32_64] : memref<4x8x128xf32, #tpu.memory_space<vmem>> -> memref<1x1x128xf32, #tpu.memory_space<vmem>>
    %128 = tpu.memref_squeeze %127 : memref<1x1x128xf32, #tpu.memory_space<vmem>> -> memref<128xf32, #tpu.memory_space<vmem>>
    %129 = tpu.memref_slice %arg9[%c1_i32_62] : memref<4x!tpu.dma_semaphore, #tpu.memory_space<semaphore_mem>> -> memref<1x!tpu.dma_semaphore, #tpu.memory_space<semaphore_mem>>
    %130 = tpu.memref_squeeze %129 : memref<1x!tpu.dma_semaphore, #tpu.memory_space<semaphore_mem>> -> memref<!tpu.dma_semaphore, #tpu.memory_space<semaphore_mem>>
    tpu.enqueue_dma source(%126 : memref<128xf32, #tpu.memory_space<any>>) target(%128 : memref<128xf32, #tpu.memory_space<vmem>>) target_semaphore(%130 : memref<!tpu.dma_semaphore, #tpu.memory_space<semaphore_mem>>)
    %c6_i32_65 = arith.constant 6 : i32
    %131 = arith.addi %76, %c6_i32_65 : i32
    %132 = arith.index_cast %131 : i32 to index
    %133 = memref.load %arg2[%132] : memref<64xi32, #tpu.memory_space<smem>>
    %c1_i32_66 = arith.constant 1 : i32
    %c1_i32_67 = arith.constant 1 : i32
    %c0_i32_68 = arith.constant 0 : i32
    %134 = tpu.memref_slice %arg3[%133, %c0_i32_68] : memref<96x128xf32, #tpu.memory_space<any>> -> memref<1x128xf32, #tpu.memory_space<any>>
    %135 = tpu.memref_squeeze %134 : memref<1x128xf32, #tpu.memory_space<any>> -> memref<128xf32, #tpu.memory_space<any>>
    %c0_i32_69 = arith.constant 0 : i32
    %136 = tpu.memref_slice %arg8[%c1_i32_66, %c6_i32_65, %c0_i32_69] : memref<4x8x128xf32, #tpu.memory_space<vmem>> -> memref<1x1x128xf32, #tpu.memory_space<vmem>>
    %137 = tpu.memref_squeeze %136 : memref<1x1x128xf32, #tpu.memory_space<vmem>> -> memref<128xf32, #tpu.memory_space<vmem>>
    %138 = tpu.memref_slice %arg9[%c1_i32_67] : memref<4x!tpu.dma_semaphore, #tpu.memory_space<semaphore_mem>> -> memref<1x!tpu.dma_semaphore, #tpu.memory_space<semaphore_mem>>
    %139 = tpu.memref_squeeze %138 : memref<1x!tpu.dma_semaphore, #tpu.memory_space<semaphore_mem>> -> memref<!tpu.dma_semaphore, #tpu.memory_space<semaphore_mem>>
    tpu.enqueue_dma source(%135 : memref<128xf32, #tpu.memory_space<any>>) target(%137 : memref<128xf32, #tpu.memory_space<vmem>>) target_semaphore(%139 : memref<!tpu.dma_semaphore, #tpu.memory_space<semaphore_mem>>)
    %c7_i32_70 = arith.constant 7 : i32
    %140 = arith.addi %76, %c7_i32_70 : i32
    %141 = arith.index_cast %140 : i32 to index
    %142 = memref.load %arg2[%141] : memref<64xi32, #tpu.memory_space<smem>>
    %c1_i32_71 = arith.constant 1 : i32
    %c1_i32_72 = arith.constant 1 : i32
    %c0_i32_73 = arith.constant 0 : i32
    %143 = tpu.memref_slice %arg3[%142, %c0_i32_73] : memref<96x128xf32, #tpu.memory_space<any>> -> memref<1x128xf32, #tpu.memory_space<any>>
    %144 = tpu.memref_squeeze %143 : memref<1x128xf32, #tpu.memory_space<any>> -> memref<128xf32, #tpu.memory_space<any>>
    %c0_i32_74 = arith.constant 0 : i32
    %145 = tpu.memref_slice %arg8[%c1_i32_71, %c7_i32_70, %c0_i32_74] : memref<4x8x128xf32, #tpu.memory_space<vmem>> -> memref<1x1x128xf32, #tpu.memory_space<vmem>>
    %146 = tpu.memref_squeeze %145 : memref<1x1x128xf32, #tpu.memory_space<vmem>> -> memref<128xf32, #tpu.memory_space<vmem>>
    %147 = tpu.memref_slice %arg9[%c1_i32_72] : memref<4x!tpu.dma_semaphore, #tpu.memory_space<semaphore_mem>> -> memref<1x!tpu.dma_semaphore, #tpu.memory_space<semaphore_mem>>
    %148 = tpu.memref_squeeze %147 : memref<1x!tpu.dma_semaphore, #tpu.memory_space<semaphore_mem>> -> memref<!tpu.dma_semaphore, #tpu.memory_space<semaphore_mem>>
    tpu.enqueue_dma source(%144 : memref<128xf32, #tpu.memory_space<any>>) target(%146 : memref<128xf32, #tpu.memory_space<vmem>>) target_semaphore(%148 : memref<!tpu.dma_semaphore, #tpu.memory_space<semaphore_mem>>)
    %c8_i32_75 = arith.constant 8 : i32
    %c16_i32 = arith.constant 16 : i32
    %149 = arith.addi %2, %c16_i32 : i32
    %c0_i32_76 = arith.constant 0 : i32
    %150 = arith.addi %149, %c0_i32_76 : i32
    %151 = arith.index_cast %150 : i32 to index
    %152 = memref.load %arg2[%151] : memref<64xi32, #tpu.memory_space<smem>>
    %c2_i32_77 = arith.constant 2 : i32
    %c2_i32_78 = arith.constant 2 : i32
    %c0_i32_79 = arith.constant 0 : i32
    %153 = tpu.memref_slice %arg3[%152, %c0_i32_79] : memref<96x128xf32, #tpu.memory_space<any>> -> memref<1x128xf32, #tpu.memory_space<any>>
    %154 = tpu.memref_squeeze %153 : memref<1x128xf32, #tpu.memory_space<any>> -> memref<128xf32, #tpu.memory_space<any>>
    %c0_i32_80 = arith.constant 0 : i32
    %155 = tpu.memref_slice %arg8[%c2_i32_77, %c0_i32_76, %c0_i32_80] : memref<4x8x128xf32, #tpu.memory_space<vmem>> -> memref<1x1x128xf32, #tpu.memory_space<vmem>>
    %156 = tpu.memref_squeeze %155 : memref<1x1x128xf32, #tpu.memory_space<vmem>> -> memref<128xf32, #tpu.memory_space<vmem>>
    %157 = tpu.memref_slice %arg9[%c2_i32_78] : memref<4x!tpu.dma_semaphore, #tpu.memory_space<semaphore_mem>> -> memref<1x!tpu.dma_semaphore, #tpu.memory_space<semaphore_mem>>
    %158 = tpu.memref_squeeze %157 : memref<1x!tpu.dma_semaphore, #tpu.memory_space<semaphore_mem>> -> memref<!tpu.dma_semaphore, #tpu.memory_space<semaphore_mem>>
    tpu.enqueue_dma source(%154 : memref<128xf32, #tpu.memory_space<any>>) target(%156 : memref<128xf32, #tpu.memory_space<vmem>>) target_semaphore(%158 : memref<!tpu.dma_semaphore, #tpu.memory_space<semaphore_mem>>)
    %c1_i32_81 = arith.constant 1 : i32
    %159 = arith.addi %149, %c1_i32_81 : i32
    %160 = arith.index_cast %159 : i32 to index
    %161 = memref.load %arg2[%160] : memref<64xi32, #tpu.memory_space<smem>>
    %c2_i32_82 = arith.constant 2 : i32
    %c2_i32_83 = arith.constant 2 : i32
    %c0_i32_84 = arith.constant 0 : i32
    %162 = tpu.memref_slice %arg3[%161, %c0_i32_84] : memref<96x128xf32, #tpu.memory_space<any>> -> memref<1x128xf32, #tpu.memory_space<any>>
    %163 = tpu.memref_squeeze %162 : memref<1x128xf32, #tpu.memory_space<any>> -> memref<128xf32, #tpu.memory_space<any>>
    %c0_i32_85 = arith.constant 0 : i32
    %164 = tpu.memref_slice %arg8[%c2_i32_82, %c1_i32_81, %c0_i32_85] : memref<4x8x128xf32, #tpu.memory_space<vmem>> -> memref<1x1x128xf32, #tpu.memory_space<vmem>>
    %165 = tpu.memref_squeeze %164 : memref<1x1x128xf32, #tpu.memory_space<vmem>> -> memref<128xf32, #tpu.memory_space<vmem>>
    %166 = tpu.memref_slice %arg9[%c2_i32_83] : memref<4x!tpu.dma_semaphore, #tpu.memory_space<semaphore_mem>> -> memref<1x!tpu.dma_semaphore, #tpu.memory_space<semaphore_mem>>
    %167 = tpu.memref_squeeze %166 : memref<1x!tpu.dma_semaphore, #tpu.memory_space<semaphore_mem>> -> memref<!tpu.dma_semaphore, #tpu.memory_space<semaphore_mem>>
    tpu.enqueue_dma source(%163 : memref<128xf32, #tpu.memory_space<any>>) target(%165 : memref<128xf32, #tpu.memory_space<vmem>>) target_semaphore(%167 : memref<!tpu.dma_semaphore, #tpu.memory_space<semaphore_mem>>)
    %c2_i32_86 = arith.constant 2 : i32
    %168 = arith.addi %149, %c2_i32_86 : i32
    %169 = arith.index_cast %168 : i32 to index
    %170 = memref.load %arg2[%169] : memref<64xi32, #tpu.memory_space<smem>>
    %c2_i32_87 = arith.constant 2 : i32
    %c2_i32_88 = arith.constant 2 : i32
    %c0_i32_89 = arith.constant 0 : i32
    %171 = tpu.memref_slice %arg3[%170, %c0_i32_89] : memref<96x128xf32, #tpu.memory_space<any>> -> memref<1x128xf32, #tpu.memory_space<any>>
    %172 = tpu.memref_squeeze %171 : memref<1x128xf32, #tpu.memory_space<any>> -> memref<128xf32, #tpu.memory_space<any>>
    %c0_i32_90 = arith.constant 0 : i32
    %173 = tpu.memref_slice %arg8[%c2_i32_87, %c2_i32_86, %c0_i32_90] : memref<4x8x128xf32, #tpu.memory_space<vmem>> -> memref<1x1x128xf32, #tpu.memory_space<vmem>>
    %174 = tpu.memref_squeeze %173 : memref<1x1x128xf32, #tpu.memory_space<vmem>> -> memref<128xf32, #tpu.memory_space<vmem>>
    %175 = tpu.memref_slice %arg9[%c2_i32_88] : memref<4x!tpu.dma_semaphore, #tpu.memory_space<semaphore_mem>> -> memref<1x!tpu.dma_semaphore, #tpu.memory_space<semaphore_mem>>
    %176 = tpu.memref_squeeze %175 : memref<1x!tpu.dma_semaphore, #tpu.memory_space<semaphore_mem>> -> memref<!tpu.dma_semaphore, #tpu.memory_space<semaphore_mem>>
    tpu.enqueue_dma source(%172 : memref<128xf32, #tpu.memory_space<any>>) target(%174 : memref<128xf32, #tpu.memory_space<vmem>>) target_semaphore(%176 : memref<!tpu.dma_semaphore, #tpu.memory_space<semaphore_mem>>)
    %c3_i32_91 = arith.constant 3 : i32
    %177 = arith.addi %149, %c3_i32_91 : i32
    %178 = arith.index_cast %177 : i32 to index
    %179 = memref.load %arg2[%178] : memref<64xi32, #tpu.memory_space<smem>>
    %c2_i32_92 = arith.constant 2 : i32
    %c2_i32_93 = arith.constant 2 : i32
    %c0_i32_94 = arith.constant 0 : i32
    %180 = tpu.memref_slice %arg3[%179, %c0_i32_94] : memref<96x128xf32, #tpu.memory_space<any>> -> memref<1x128xf32, #tpu.memory_space<any>>
    %181 = tpu.memref_squeeze %180 : memref<1x128xf32, #tpu.memory_space<any>> -> memref<128xf32, #tpu.memory_space<any>>
    %c0_i32_95 = arith.constant 0 : i32
    %182 = tpu.memref_slice %arg8[%c2_i32_92, %c3_i32_91, %c0_i32_95] : memref<4x8x128xf32, #tpu.memory_space<vmem>> -> memref<1x1x128xf32, #tpu.memory_space<vmem>>
    %183 = tpu.memref_squeeze %182 : memref<1x1x128xf32, #tpu.memory_space<vmem>> -> memref<128xf32, #tpu.memory_space<vmem>>
    %184 = tpu.memref_slice %arg9[%c2_i32_93] : memref<4x!tpu.dma_semaphore, #tpu.memory_space<semaphore_mem>> -> memref<1x!tpu.dma_semaphore, #tpu.memory_space<semaphore_mem>>
    %185 = tpu.memref_squeeze %184 : memref<1x!tpu.dma_semaphore, #tpu.memory_space<semaphore_mem>> -> memref<!tpu.dma_semaphore, #tpu.memory_space<semaphore_mem>>
    tpu.enqueue_dma source(%181 : memref<128xf32, #tpu.memory_space<any>>) target(%183 : memref<128xf32, #tpu.memory_space<vmem>>) target_semaphore(%185 : memref<!tpu.dma_semaphore, #tpu.memory_space<semaphore_mem>>)
    %c4_i32_96 = arith.constant 4 : i32
    %186 = arith.addi %149, %c4_i32_96 : i32
    %187 = arith.index_cast %186 : i32 to index
    %188 = memref.load %arg2[%187] : memref<64xi32, #tpu.memory_space<smem>>
    %c2_i32_97 = arith.constant 2 : i32
    %c2_i32_98 = arith.constant 2 : i32
    %c0_i32_99 = arith.constant 0 : i32
    %189 = tpu.memref_slice %arg3[%188, %c0_i32_99] : memref<96x128xf32, #tpu.memory_space<any>> -> memref<1x128xf32, #tpu.memory_space<any>>
    %190 = tpu.memref_squeeze %189 : memref<1x128xf32, #tpu.memory_space<any>> -> memref<128xf32, #tpu.memory_space<any>>
    %c0_i32_100 = arith.constant 0 : i32
    %191 = tpu.memref_slice %arg8[%c2_i32_97, %c4_i32_96, %c0_i32_100] : memref<4x8x128xf32, #tpu.memory_space<vmem>> -> memref<1x1x128xf32, #tpu.memory_space<vmem>>
    %192 = tpu.memref_squeeze %191 : memref<1x1x128xf32, #tpu.memory_space<vmem>> -> memref<128xf32, #tpu.memory_space<vmem>>
    %193 = tpu.memref_slice %arg9[%c2_i32_98] : memref<4x!tpu.dma_semaphore, #tpu.memory_space<semaphore_mem>> -> memref<1x!tpu.dma_semaphore, #tpu.memory_space<semaphore_mem>>
    %194 = tpu.memref_squeeze %193 : memref<1x!tpu.dma_semaphore, #tpu.memory_space<semaphore_mem>> -> memref<!tpu.dma_semaphore, #tpu.memory_space<semaphore_mem>>
    tpu.enqueue_dma source(%190 : memref<128xf32, #tpu.memory_space<any>>) target(%192 : memref<128xf32, #tpu.memory_space<vmem>>) target_semaphore(%194 : memref<!tpu.dma_semaphore, #tpu.memory_space<semaphore_mem>>)
    %c5_i32_101 = arith.constant 5 : i32
    %195 = arith.addi %149, %c5_i32_101 : i32
    %196 = arith.index_cast %195 : i32 to index
    %197 = memref.load %arg2[%196] : memref<64xi32, #tpu.memory_space<smem>>
    %c2_i32_102 = arith.constant 2 : i32
    %c2_i32_103 = arith.constant 2 : i32
    %c0_i32_104 = arith.constant 0 : i32
    %198 = tpu.memref_slice %arg3[%197, %c0_i32_104] : memref<96x128xf32, #tpu.memory_space<any>> -> memref<1x128xf32, #tpu.memory_space<any>>
    %199 = tpu.memref_squeeze %198 : memref<1x128xf32, #tpu.memory_space<any>> -> memref<128xf32, #tpu.memory_space<any>>
    %c0_i32_105 = arith.constant 0 : i32
    %200 = tpu.memref_slice %arg8[%c2_i32_102, %c5_i32_101, %c0_i32_105] : memref<4x8x128xf32, #tpu.memory_space<vmem>> -> memref<1x1x128xf32, #tpu.memory_space<vmem>>
    %201 = tpu.memref_squeeze %200 : memref<1x1x128xf32, #tpu.memory_space<vmem>> -> memref<128xf32, #tpu.memory_space<vmem>>
    %202 = tpu.memref_slice %arg9[%c2_i32_103] : memref<4x!tpu.dma_semaphore, #tpu.memory_space<semaphore_mem>> -> memref<1x!tpu.dma_semaphore, #tpu.memory_space<semaphore_mem>>
    %203 = tpu.memref_squeeze %202 : memref<1x!tpu.dma_semaphore, #tpu.memory_space<semaphore_mem>> -> memref<!tpu.dma_semaphore, #tpu.memory_space<semaphore_mem>>
    tpu.enqueue_dma source(%199 : memref<128xf32, #tpu.memory_space<any>>) target(%201 : memref<128xf32, #tpu.memory_space<vmem>>) target_semaphore(%203 : memref<!tpu.dma_semaphore, #tpu.memory_space<semaphore_mem>>)
    %c6_i32_106 = arith.constant 6 : i32
    %204 = arith.addi %149, %c6_i32_106 : i32
    %205 = arith.index_cast %204 : i32 to index
    %206 = memref.load %arg2[%205] : memref<64xi32, #tpu.memory_space<smem>>
    %c2_i32_107 = arith.constant 2 : i32
    %c2_i32_108 = arith.constant 2 : i32
    %c0_i32_109 = arith.constant 0 : i32
    %207 = tpu.memref_slice %arg3[%206, %c0_i32_109] : memref<96x128xf32, #tpu.memory_space<any>> -> memref<1x128xf32, #tpu.memory_space<any>>
    %208 = tpu.memref_squeeze %207 : memref<1x128xf32, #tpu.memory_space<any>> -> memref<128xf32, #tpu.memory_space<any>>
    %c0_i32_110 = arith.constant 0 : i32
    %209 = tpu.memref_slice %arg8[%c2_i32_107, %c6_i32_106, %c0_i32_110] : memref<4x8x128xf32, #tpu.memory_space<vmem>> -> memref<1x1x128xf32, #tpu.memory_space<vmem>>
    %210 = tpu.memref_squeeze %209 : memref<1x1x128xf32, #tpu.memory_space<vmem>> -> memref<128xf32, #tpu.memory_space<vmem>>
    %211 = tpu.memref_slice %arg9[%c2_i32_108] : memref<4x!tpu.dma_semaphore, #tpu.memory_space<semaphore_mem>> -> memref<1x!tpu.dma_semaphore, #tpu.memory_space<semaphore_mem>>
    %212 = tpu.memref_squeeze %211 : memref<1x!tpu.dma_semaphore, #tpu.memory_space<semaphore_mem>> -> memref<!tpu.dma_semaphore, #tpu.memory_space<semaphore_mem>>
    tpu.enqueue_dma source(%208 : memref<128xf32, #tpu.memory_space<any>>) target(%210 : memref<128xf32, #tpu.memory_space<vmem>>) target_semaphore(%212 : memref<!tpu.dma_semaphore, #tpu.memory_space<semaphore_mem>>)
    %c7_i32_111 = arith.constant 7 : i32
    %213 = arith.addi %149, %c7_i32_111 : i32
    %214 = arith.index_cast %213 : i32 to index
    %215 = memref.load %arg2[%214] : memref<64xi32, #tpu.memory_space<smem>>
    %c2_i32_112 = arith.constant 2 : i32
    %c2_i32_113 = arith.constant 2 : i32
    %c0_i32_114 = arith.constant 0 : i32
    %216 = tpu.memref_slice %arg3[%215, %c0_i32_114] : memref<96x128xf32, #tpu.memory_space<any>> -> memref<1x128xf32, #tpu.memory_space<any>>
    %217 = tpu.memref_squeeze %216 : memref<1x128xf32, #tpu.memory_space<any>> -> memref<128xf32, #tpu.memory_space<any>>
    %c0_i32_115 = arith.constant 0 : i32
    %218 = tpu.memref_slice %arg8[%c2_i32_112, %c7_i32_111, %c0_i32_115] : memref<4x8x128xf32, #tpu.memory_space<vmem>> -> memref<1x1x128xf32, #tpu.memory_space<vmem>>
    %219 = tpu.memref_squeeze %218 : memref<1x1x128xf32, #tpu.memory_space<vmem>> -> memref<128xf32, #tpu.memory_space<vmem>>
    %220 = tpu.memref_slice %arg9[%c2_i32_113] : memref<4x!tpu.dma_semaphore, #tpu.memory_space<semaphore_mem>> -> memref<1x!tpu.dma_semaphore, #tpu.memory_space<semaphore_mem>>
    %221 = tpu.memref_squeeze %220 : memref<1x!tpu.dma_semaphore, #tpu.memory_space<semaphore_mem>> -> memref<!tpu.dma_semaphore, #tpu.memory_space<semaphore_mem>>
    tpu.enqueue_dma source(%217 : memref<128xf32, #tpu.memory_space<any>>) target(%219 : memref<128xf32, #tpu.memory_space<vmem>>) target_semaphore(%221 : memref<!tpu.dma_semaphore, #tpu.memory_space<semaphore_mem>>)
    %c8_i32_116 = arith.constant 8 : i32
    %c24_i32 = arith.constant 24 : i32
    %222 = arith.addi %2, %c24_i32 : i32
    %c0_i32_117 = arith.constant 0 : i32
    %223 = arith.addi %222, %c0_i32_117 : i32
    %224 = arith.index_cast %223 : i32 to index
    %225 = memref.load %arg2[%224] : memref<64xi32, #tpu.memory_space<smem>>
    %c3_i32_118 = arith.constant 3 : i32
    %c3_i32_119 = arith.constant 3 : i32
    %c0_i32_120 = arith.constant 0 : i32
    %226 = tpu.memref_slice %arg3[%225, %c0_i32_120] : memref<96x128xf32, #tpu.memory_space<any>> -> memref<1x128xf32, #tpu.memory_space<any>>
    %227 = tpu.memref_squeeze %226 : memref<1x128xf32, #tpu.memory_space<any>> -> memref<128xf32, #tpu.memory_space<any>>
    %c0_i32_121 = arith.constant 0 : i32
    %228 = tpu.memref_slice %arg8[%c3_i32_118, %c0_i32_117, %c0_i32_121] : memref<4x8x128xf32, #tpu.memory_space<vmem>> -> memref<1x1x128xf32, #tpu.memory_space<vmem>>
    %229 = tpu.memref_squeeze %228 : memref<1x1x128xf32, #tpu.memory_space<vmem>> -> memref<128xf32, #tpu.memory_space<vmem>>
    %230 = tpu.memref_slice %arg9[%c3_i32_119] : memref<4x!tpu.dma_semaphore, #tpu.memory_space<semaphore_mem>> -> memref<1x!tpu.dma_semaphore, #tpu.memory_space<semaphore_mem>>
    %231 = tpu.memref_squeeze %230 : memref<1x!tpu.dma_semaphore, #tpu.memory_space<semaphore_mem>> -> memref<!tpu.dma_semaphore, #tpu.memory_space<semaphore_mem>>
    tpu.enqueue_dma source(%227 : memref<128xf32, #tpu.memory_space<any>>) target(%229 : memref<128xf32, #tpu.memory_space<vmem>>) target_semaphore(%231 : memref<!tpu.dma_semaphore, #tpu.memory_space<semaphore_mem>>)
    %c1_i32_122 = arith.constant 1 : i32
    %232 = arith.addi %222, %c1_i32_122 : i32
    %233 = arith.index_cast %232 : i32 to index
    %234 = memref.load %arg2[%233] : memref<64xi32, #tpu.memory_space<smem>>
    %c3_i32_123 = arith.constant 3 : i32
    %c3_i32_124 = arith.constant 3 : i32
    %c0_i32_125 = arith.constant 0 : i32
    %235 = tpu.memref_slice %arg3[%234, %c0_i32_125] : memref<96x128xf32, #tpu.memory_space<any>> -> memref<1x128xf32, #tpu.memory_space<any>>
    %236 = tpu.memref_squeeze %235 : memref<1x128xf32, #tpu.memory_space<any>> -> memref<128xf32, #tpu.memory_space<any>>
    %c0_i32_126 = arith.constant 0 : i32
    %237 = tpu.memref_slice %arg8[%c3_i32_123, %c1_i32_122, %c0_i32_126] : memref<4x8x128xf32, #tpu.memory_space<vmem>> -> memref<1x1x128xf32, #tpu.memory_space<vmem>>
    %238 = tpu.memref_squeeze %237 : memref<1x1x128xf32, #tpu.memory_space<vmem>> -> memref<128xf32, #tpu.memory_space<vmem>>
    %239 = tpu.memref_slice %arg9[%c3_i32_124] : memref<4x!tpu.dma_semaphore, #tpu.memory_space<semaphore_mem>> -> memref<1x!tpu.dma_semaphore, #tpu.memory_space<semaphore_mem>>
    %240 = tpu.memref_squeeze %239 : memref<1x!tpu.dma_semaphore, #tpu.memory_space<semaphore_mem>> -> memref<!tpu.dma_semaphore, #tpu.memory_space<semaphore_mem>>
    tpu.enqueue_dma source(%236 : memref<128xf32, #tpu.memory_space<any>>) target(%238 : memref<128xf32, #tpu.memory_space<vmem>>) target_semaphore(%240 : memref<!tpu.dma_semaphore, #tpu.memory_space<semaphore_mem>>)
    %c2_i32_127 = arith.constant 2 : i32
    %241 = arith.addi %222, %c2_i32_127 : i32
    %242 = arith.index_cast %241 : i32 to index
    %243 = memref.load %arg2[%242] : memref<64xi32, #tpu.memory_space<smem>>
    %c3_i32_128 = arith.constant 3 : i32
    %c3_i32_129 = arith.constant 3 : i32
    %c0_i32_130 = arith.constant 0 : i32
    %244 = tpu.memref_slice %arg3[%243, %c0_i32_130] : memref<96x128xf32, #tpu.memory_space<any>> -> memref<1x128xf32, #tpu.memory_space<any>>
    %245 = tpu.memref_squeeze %244 : memref<1x128xf32, #tpu.memory_space<any>> -> memref<128xf32, #tpu.memory_space<any>>
    %c0_i32_131 = arith.constant 0 : i32
    %246 = tpu.memref_slice %arg8[%c3_i32_128, %c2_i32_127, %c0_i32_131] : memref<4x8x128xf32, #tpu.memory_space<vmem>> -> memref<1x1x128xf32, #tpu.memory_space<vmem>>
    %247 = tpu.memref_squeeze %246 : memref<1x1x128xf32, #tpu.memory_space<vmem>> -> memref<128xf32, #tpu.memory_space<vmem>>
    %248 = tpu.memref_slice %arg9[%c3_i32_129] : memref<4x!tpu.dma_semaphore, #tpu.memory_space<semaphore_mem>> -> memref<1x!tpu.dma_semaphore, #tpu.memory_space<semaphore_mem>>
    %249 = tpu.memref_squeeze %248 : memref<1x!tpu.dma_semaphore, #tpu.memory_space<semaphore_mem>> -> memref<!tpu.dma_semaphore, #tpu.memory_space<semaphore_mem>>
    tpu.enqueue_dma source(%245 : memref<128xf32, #tpu.memory_space<any>>) target(%247 : memref<128xf32, #tpu.memory_space<vmem>>) target_semaphore(%249 : memref<!tpu.dma_semaphore, #tpu.memory_space<semaphore_mem>>)
    %c3_i32_132 = arith.constant 3 : i32
    %250 = arith.addi %222, %c3_i32_132 : i32
    %251 = arith.index_cast %250 : i32 to index
    %252 = memref.load %arg2[%251] : memref<64xi32, #tpu.memory_space<smem>>
    %c3_i32_133 = arith.constant 3 : i32
    %c3_i32_134 = arith.constant 3 : i32
    %c0_i32_135 = arith.constant 0 : i32
    %253 = tpu.memref_slice %arg3[%252, %c0_i32_135] : memref<96x128xf32, #tpu.memory_space<any>> -> memref<1x128xf32, #tpu.memory_space<any>>
    %254 = tpu.memref_squeeze %253 : memref<1x128xf32, #tpu.memory_space<any>> -> memref<128xf32, #tpu.memory_space<any>>
    %c0_i32_136 = arith.constant 0 : i32
    %255 = tpu.memref_slice %arg8[%c3_i32_133, %c3_i32_132, %c0_i32_136] : memref<4x8x128xf32, #tpu.memory_space<vmem>> -> memref<1x1x128xf32, #tpu.memory_space<vmem>>
    %256 = tpu.memref_squeeze %255 : memref<1x1x128xf32, #tpu.memory_space<vmem>> -> memref<128xf32, #tpu.memory_space<vmem>>
    %257 = tpu.memref_slice %arg9[%c3_i32_134] : memref<4x!tpu.dma_semaphore, #tpu.memory_space<semaphore_mem>> -> memref<1x!tpu.dma_semaphore, #tpu.memory_space<semaphore_mem>>
    %258 = tpu.memref_squeeze %257 : memref<1x!tpu.dma_semaphore, #tpu.memory_space<semaphore_mem>> -> memref<!tpu.dma_semaphore, #tpu.memory_space<semaphore_mem>>
    tpu.enqueue_dma source(%254 : memref<128xf32, #tpu.memory_space<any>>) target(%256 : memref<128xf32, #tpu.memory_space<vmem>>) target_semaphore(%258 : memref<!tpu.dma_semaphore, #tpu.memory_space<semaphore_mem>>)
    %c4_i32_137 = arith.constant 4 : i32
    %259 = arith.addi %222, %c4_i32_137 : i32
    %260 = arith.index_cast %259 : i32 to index
    %261 = memref.load %arg2[%260] : memref<64xi32, #tpu.memory_space<smem>>
    %c3_i32_138 = arith.constant 3 : i32
    %c3_i32_139 = arith.constant 3 : i32
    %c0_i32_140 = arith.constant 0 : i32
    %262 = tpu.memref_slice %arg3[%261, %c0_i32_140] : memref<96x128xf32, #tpu.memory_space<any>> -> memref<1x128xf32, #tpu.memory_space<any>>
    %263 = tpu.memref_squeeze %262 : memref<1x128xf32, #tpu.memory_space<any>> -> memref<128xf32, #tpu.memory_space<any>>
    %c0_i32_141 = arith.constant 0 : i32
    %264 = tpu.memref_slice %arg8[%c3_i32_138, %c4_i32_137, %c0_i32_141] : memref<4x8x128xf32, #tpu.memory_space<vmem>> -> memref<1x1x128xf32, #tpu.memory_space<vmem>>
    %265 = tpu.memref_squeeze %264 : memref<1x1x128xf32, #tpu.memory_space<vmem>> -> memref<128xf32, #tpu.memory_space<vmem>>
    %266 = tpu.memref_slice %arg9[%c3_i32_139] : memref<4x!tpu.dma_semaphore, #tpu.memory_space<semaphore_mem>> -> memref<1x!tpu.dma_semaphore, #tpu.memory_space<semaphore_mem>>
    %267 = tpu.memref_squeeze %266 : memref<1x!tpu.dma_semaphore, #tpu.memory_space<semaphore_mem>> -> memref<!tpu.dma_semaphore, #tpu.memory_space<semaphore_mem>>
    tpu.enqueue_dma source(%263 : memref<128xf32, #tpu.memory_space<any>>) target(%265 : memref<128xf32, #tpu.memory_space<vmem>>) target_semaphore(%267 : memref<!tpu.dma_semaphore, #tpu.memory_space<semaphore_mem>>)
    %c5_i32_142 = arith.constant 5 : i32
    %268 = arith.addi %222, %c5_i32_142 : i32
    %269 = arith.index_cast %268 : i32 to index
    %270 = memref.load %arg2[%269] : memref<64xi32, #tpu.memory_space<smem>>
    %c3_i32_143 = arith.constant 3 : i32
    %c3_i32_144 = arith.constant 3 : i32
    %c0_i32_145 = arith.constant 0 : i32
    %271 = tpu.memref_slice %arg3[%270, %c0_i32_145] : memref<96x128xf32, #tpu.memory_space<any>> -> memref<1x128xf32, #tpu.memory_space<any>>
    %272 = tpu.memref_squeeze %271 : memref<1x128xf32, #tpu.memory_space<any>> -> memref<128xf32, #tpu.memory_space<any>>
    %c0_i32_146 = arith.constant 0 : i32
    %273 = tpu.memref_slice %arg8[%c3_i32_143, %c5_i32_142, %c0_i32_146] : memref<4x8x128xf32, #tpu.memory_space<vmem>> -> memref<1x1x128xf32, #tpu.memory_space<vmem>>
    %274 = tpu.memref_squeeze %273 : memref<1x1x128xf32, #tpu.memory_space<vmem>> -> memref<128xf32, #tpu.memory_space<vmem>>
    %275 = tpu.memref_slice %arg9[%c3_i32_144] : memref<4x!tpu.dma_semaphore, #tpu.memory_space<semaphore_mem>> -> memref<1x!tpu.dma_semaphore, #tpu.memory_space<semaphore_mem>>
    %276 = tpu.memref_squeeze %275 : memref<1x!tpu.dma_semaphore, #tpu.memory_space<semaphore_mem>> -> memref<!tpu.dma_semaphore, #tpu.memory_space<semaphore_mem>>
    tpu.enqueue_dma source(%272 : memref<128xf32, #tpu.memory_space<any>>) target(%274 : memref<128xf32, #tpu.memory_space<vmem>>) target_semaphore(%276 : memref<!tpu.dma_semaphore, #tpu.memory_space<semaphore_mem>>)
    %c6_i32_147 = arith.constant 6 : i32
    %277 = arith.addi %222, %c6_i32_147 : i32
    %278 = arith.index_cast %277 : i32 to index
    %279 = memref.load %arg2[%278] : memref<64xi32, #tpu.memory_space<smem>>
    %c3_i32_148 = arith.constant 3 : i32
    %c3_i32_149 = arith.constant 3 : i32
    %c0_i32_150 = arith.constant 0 : i32
    %280 = tpu.memref_slice %arg3[%279, %c0_i32_150] : memref<96x128xf32, #tpu.memory_space<any>> -> memref<1x128xf32, #tpu.memory_space<any>>
    %281 = tpu.memref_squeeze %280 : memref<1x128xf32, #tpu.memory_space<any>> -> memref<128xf32, #tpu.memory_space<any>>
    %c0_i32_151 = arith.constant 0 : i32
    %282 = tpu.memref_slice %arg8[%c3_i32_148, %c6_i32_147, %c0_i32_151] : memref<4x8x128xf32, #tpu.memory_space<vmem>> -> memref<1x1x128xf32, #tpu.memory_space<vmem>>
    %283 = tpu.memref_squeeze %282 : memref<1x1x128xf32, #tpu.memory_space<vmem>> -> memref<128xf32, #tpu.memory_space<vmem>>
    %284 = tpu.memref_slice %arg9[%c3_i32_149] : memref<4x!tpu.dma_semaphore, #tpu.memory_space<semaphore_mem>> -> memref<1x!tpu.dma_semaphore, #tpu.memory_space<semaphore_mem>>
    %285 = tpu.memref_squeeze %284 : memref<1x!tpu.dma_semaphore, #tpu.memory_space<semaphore_mem>> -> memref<!tpu.dma_semaphore, #tpu.memory_space<semaphore_mem>>
    tpu.enqueue_dma source(%281 : memref<128xf32, #tpu.memory_space<any>>) target(%283 : memref<128xf32, #tpu.memory_space<vmem>>) target_semaphore(%285 : memref<!tpu.dma_semaphore, #tpu.memory_space<semaphore_mem>>)
    %c7_i32_152 = arith.constant 7 : i32
    %286 = arith.addi %222, %c7_i32_152 : i32
    %287 = arith.index_cast %286 : i32 to index
    %288 = memref.load %arg2[%287] : memref<64xi32, #tpu.memory_space<smem>>
    %c3_i32_153 = arith.constant 3 : i32
    %c3_i32_154 = arith.constant 3 : i32
    %c0_i32_155 = arith.constant 0 : i32
    %289 = tpu.memref_slice %arg3[%288, %c0_i32_155] : memref<96x128xf32, #tpu.memory_space<any>> -> memref<1x128xf32, #tpu.memory_space<any>>
    %290 = tpu.memref_squeeze %289 : memref<1x128xf32, #tpu.memory_space<any>> -> memref<128xf32, #tpu.memory_space<any>>
    %c0_i32_156 = arith.constant 0 : i32
    %291 = tpu.memref_slice %arg8[%c3_i32_153, %c7_i32_152, %c0_i32_156] : memref<4x8x128xf32, #tpu.memory_space<vmem>> -> memref<1x1x128xf32, #tpu.memory_space<vmem>>
    %292 = tpu.memref_squeeze %291 : memref<1x1x128xf32, #tpu.memory_space<vmem>> -> memref<128xf32, #tpu.memory_space<vmem>>
    %293 = tpu.memref_slice %arg9[%c3_i32_154] : memref<4x!tpu.dma_semaphore, #tpu.memory_space<semaphore_mem>> -> memref<1x!tpu.dma_semaphore, #tpu.memory_space<semaphore_mem>>
    %294 = tpu.memref_squeeze %293 : memref<1x!tpu.dma_semaphore, #tpu.memory_space<semaphore_mem>> -> memref<!tpu.dma_semaphore, #tpu.memory_space<semaphore_mem>>
    tpu.enqueue_dma source(%290 : memref<128xf32, #tpu.memory_space<any>>) target(%292 : memref<128xf32, #tpu.memory_space<vmem>>) target_semaphore(%294 : memref<!tpu.dma_semaphore, #tpu.memory_space<semaphore_mem>>)
    %c8_i32_157 = arith.constant 8 : i32
    %c0 = arith.constant 0 : index
    %c0_158 = arith.constant 0 : index
    %295 = vector.load %arg5[%c0, %c0_158] : memref<1x128xf32, #tpu.memory_space<vmem>>, vector<1x128xf32>
    %c0_159 = arith.constant 0 : index
    %c0_160 = arith.constant 0 : index
    %296 = vector.load %arg6[%c0_159, %c0_160] : memref<1x128xf32, #tpu.memory_space<vmem>>, vector<1x128xf32>
    %c0_i32_161 = arith.constant 0 : i32
    %c0_i32_162 = arith.constant 0 : i32
    %c0_i32_163 = arith.constant 0 : i32
    %c0_i32_164 = arith.constant 0 : i32
    %297 = tpu.memref_slice %arg3[%c0_i32_163, %c0_i32_164] : memref<96x128xf32, #tpu.memory_space<any>> -> memref<8x128xf32, #tpu.memory_space<any>>
    %c0_i32_165 = arith.constant 0 : i32
    %c0_i32_166 = arith.constant 0 : i32
    %298 = tpu.memref_slice %arg8[%c0_i32_161, %c0_i32_165, %c0_i32_166] : memref<4x8x128xf32, #tpu.memory_space<vmem>> -> memref<1x8x128xf32, #tpu.memory_space<vmem>>
    %299 = tpu.memref_squeeze %298 : memref<1x8x128xf32, #tpu.memory_space<vmem>> -> memref<8x128xf32, #tpu.memory_space<vmem>>
    %300 = tpu.memref_slice %arg9[%c0_i32_162] : memref<4x!tpu.dma_semaphore, #tpu.memory_space<semaphore_mem>> -> memref<1x!tpu.dma_semaphore, #tpu.memory_space<semaphore_mem>>
    %301 = tpu.memref_squeeze %300 : memref<1x!tpu.dma_semaphore, #tpu.memory_space<semaphore_mem>> -> memref<!tpu.dma_semaphore, #tpu.memory_space<semaphore_mem>>
    tpu.wait_dma2 semaphore(%301 : memref<!tpu.dma_semaphore, #tpu.memory_space<semaphore_mem>>) src(%297 : memref<8x128xf32, #tpu.memory_space<any>>) dst(%299 : memref<8x128xf32, #tpu.memory_space<vmem>>)
    %c0_167 = arith.constant 0 : index
    %c0_168 = arith.constant 0 : index
    %c0_169 = arith.constant 0 : index
    %302 = vector.load %arg8[%c0_167, %c0_168, %c0_169] : memref<4x8x128xf32, #tpu.memory_space<vmem>>, vector<1x8x128xf32>
    %303 = vector.shape_cast %302 : vector<1x8x128xf32> to vector<8x128xf32>
    %c32_i32_170 = arith.constant 32 : i32
    %304 = arith.muli %arg1, %c32_i32_170 : i32
    %c0_i32_171 = arith.constant 0 : i32
    %305 = arith.addi %304, %c0_i32_171 : i32
    %306 = tpu.assume_multiple %305, 8 : i32
    %307 = arith.index_cast %306 : i32 to index
    %c0_172 = arith.constant 0 : index
    %308 = vector.load %arg4[%307, %c0_172] : memref<32x128xf32, #tpu.memory_space<vmem>>, vector<8x128xf32>
    %309 = arith.addf %303, %308 : vector<8x128xf32>
    %cst = arith.constant dense<0.000000e+00> : vector<8xf32>
    %310 = vector.multi_reduction <add>, %309, %cst [1] : vector<8x128xf32> to vector<8xf32>
    %311 = vector.shape_cast %310 : vector<8xf32> to vector<8x1xf32>
    %cst_173 = arith.constant 1.280000e+02 : f32
    %312 = vector.broadcast %cst_173 : f32 to vector<8x1xf32>
    %313 = arith.divf %311, %312 : vector<8x1xf32>
    %314 = vector.broadcast %313 : vector<8x1xf32> to vector<8x128xf32>
    %315 = arith.subf %309, %314 : vector<8x128xf32>
    %316 = arith.mulf %315, %315 : vector<8x128xf32>
    %cst_174 = arith.constant dense<0.000000e+00> : vector<8xf32>
    %317 = vector.multi_reduction <add>, %316, %cst_174 [1] : vector<8x128xf32> to vector<8xf32>
    %318 = vector.shape_cast %317 : vector<8xf32> to vector<8x1xf32>
    %cst_175 = arith.constant 1.280000e+02 : f32
    %319 = vector.broadcast %cst_175 : f32 to vector<8x1xf32>
    %320 = arith.divf %318, %319 : vector<8x1xf32>
    %cst_176 = arith.constant 9.99999996E-13 : f32
    %321 = vector.broadcast %cst_176 : f32 to vector<8x1xf32>
    %322 = arith.addf %320, %321 : vector<8x1xf32>
    %323 = math.rsqrt %322 : vector<8x1xf32>
    %324 = vector.broadcast %323 : vector<8x1xf32> to vector<8x128xf32>
    %325 = arith.mulf %315, %324 : vector<8x128xf32>
    %326 = vector.broadcast %295 : vector<1x128xf32> to vector<8x128xf32>
    %327 = arith.mulf %325, %326 : vector<8x128xf32>
    %328 = vector.broadcast %296 : vector<1x128xf32> to vector<8x128xf32>
    %329 = arith.addf %327, %328 : vector<8x128xf32>
    %c0_177 = arith.constant 0 : index
    %c0_178 = arith.constant 0 : index
    %330 = vector.load %arg7[%c0_177, %c0_178] : memref<32x128xf32, #tpu.memory_space<vmem>>, vector<8x128xf32>
    tpu.vector_store %arg7[%c0_177, %c0_178], %329 {strides = array<i32>} : memref<32x128xf32, #tpu.memory_space<vmem>>, vector<8x128xf32>,
    %c1_i32_179 = arith.constant 1 : i32
    %c1_i32_180 = arith.constant 1 : i32
    %c0_i32_181 = arith.constant 0 : i32
    %c0_i32_182 = arith.constant 0 : i32
    %331 = tpu.memref_slice %arg3[%c0_i32_181, %c0_i32_182] : memref<96x128xf32, #tpu.memory_space<any>> -> memref<8x128xf32, #tpu.memory_space<any>>
    %c0_i32_183 = arith.constant 0 : i32
    %c0_i32_184 = arith.constant 0 : i32
    %332 = tpu.memref_slice %arg8[%c1_i32_179, %c0_i32_183, %c0_i32_184] : memref<4x8x128xf32, #tpu.memory_space<vmem>> -> memref<1x8x128xf32, #tpu.memory_space<vmem>>
    %333 = tpu.memref_squeeze %332 : memref<1x8x128xf32, #tpu.memory_space<vmem>> -> memref<8x128xf32, #tpu.memory_space<vmem>>
    %334 = tpu.memref_slice %arg9[%c1_i32_180] : memref<4x!tpu.dma_semaphore, #tpu.memory_space<semaphore_mem>> -> memref<1x!tpu.dma_semaphore, #tpu.memory_space<semaphore_mem>>
    %335 = tpu.memref_squeeze %334 : memref<1x!tpu.dma_semaphore, #tpu.memory_space<semaphore_mem>> -> memref<!tpu.dma_semaphore, #tpu.memory_space<semaphore_mem>>
    tpu.wait_dma2 semaphore(%335 : memref<!tpu.dma_semaphore, #tpu.memory_space<semaphore_mem>>) src(%331 : memref<8x128xf32, #tpu.memory_space<any>>) dst(%333 : memref<8x128xf32, #tpu.memory_space<vmem>>)
    %c1 = arith.constant 1 : index
    %c0_185 = arith.constant 0 : index
    %c0_186 = arith.constant 0 : index
    %336 = vector.load %arg8[%c1, %c0_185, %c0_186] : memref<4x8x128xf32, #tpu.memory_space<vmem>>, vector<1x8x128xf32>
    %337 = vector.shape_cast %336 : vector<1x8x128xf32> to vector<8x128xf32>
    %c32_i32_187 = arith.constant 32 : i32
    %338 = arith.muli %arg1, %c32_i32_187 : i32
    %c8_i32_188 = arith.constant 8 : i32
    %339 = arith.addi %338, %c8_i32_188 : i32
    %340 = tpu.assume_multiple %339, 8 : i32
    %341 = arith.index_cast %340 : i32 to index
    %c0_189 = arith.constant 0 : index
    %342 = vector.load %arg4[%341, %c0_189] : memref<32x128xf32, #tpu.memory_space<vmem>>, vector<8x128xf32>
    %343 = arith.addf %337, %342 : vector<8x128xf32>
    %cst_190 = arith.constant dense<0.000000e+00> : vector<8xf32>
    %344 = vector.multi_reduction <add>, %343, %cst_190 [1] : vector<8x128xf32> to vector<8xf32>
    %345 = vector.shape_cast %344 : vector<8xf32> to vector<8x1xf32>
    %cst_191 = arith.constant 1.280000e+02 : f32
    %346 = vector.broadcast %cst_191 : f32 to vector<8x1xf32>
    %347 = arith.divf %345, %346 : vector<8x1xf32>
    %348 = vector.broadcast %347 : vector<8x1xf32> to vector<8x128xf32>
    %349 = arith.subf %343, %348 : vector<8x128xf32>
    %350 = arith.mulf %349, %349 : vector<8x128xf32>
    %cst_192 = arith.constant dense<0.000000e+00> : vector<8xf32>
    %351 = vector.multi_reduction <add>, %350, %cst_192 [1] : vector<8x128xf32> to vector<8xf32>
    %352 = vector.shape_cast %351 : vector<8xf32> to vector<8x1xf32>
    %cst_193 = arith.constant 1.280000e+02 : f32
    %353 = vector.broadcast %cst_193 : f32 to vector<8x1xf32>
    %354 = arith.divf %352, %353 : vector<8x1xf32>
    %cst_194 = arith.constant 9.99999996E-13 : f32
    %355 = vector.broadcast %cst_194 : f32 to vector<8x1xf32>
    %356 = arith.addf %354, %355 : vector<8x1xf32>
    %357 = math.rsqrt %356 : vector<8x1xf32>
    %358 = vector.broadcast %357 : vector<8x1xf32> to vector<8x128xf32>
    %359 = arith.mulf %349, %358 : vector<8x128xf32>
    %360 = vector.broadcast %295 : vector<1x128xf32> to vector<8x128xf32>
    %361 = arith.mulf %359, %360 : vector<8x128xf32>
    %362 = vector.broadcast %296 : vector<1x128xf32> to vector<8x128xf32>
    %363 = arith.addf %361, %362 : vector<8x128xf32>
    %c8 = arith.constant 8 : index
    %c0_195 = arith.constant 0 : index
    %364 = vector.load %arg7[%c8, %c0_195] : memref<32x128xf32, #tpu.memory_space<vmem>>, vector<8x128xf32>
    tpu.vector_store %arg7[%c8, %c0_195], %363 {strides = array<i32>} : memref<32x128xf32, #tpu.memory_space<vmem>>, vector<8x128xf32>,
    %c2_i32_196 = arith.constant 2 : i32
    %c2_i32_197 = arith.constant 2 : i32
    %c0_i32_198 = arith.constant 0 : i32
    %c0_i32_199 = arith.constant 0 : i32
    %365 = tpu.memref_slice %arg3[%c0_i32_198, %c0_i32_199] : memref<96x128xf32, #tpu.memory_space<any>> -> memref<8x128xf32, #tpu.memory_space<any>>
    %c0_i32_200 = arith.constant 0 : i32
    %c0_i32_201 = arith.constant 0 : i32
    %366 = tpu.memref_slice %arg8[%c2_i32_196, %c0_i32_200, %c0_i32_201] : memref<4x8x128xf32, #tpu.memory_space<vmem>> -> memref<1x8x128xf32, #tpu.memory_space<vmem>>
    %367 = tpu.memref_squeeze %366 : memref<1x8x128xf32, #tpu.memory_space<vmem>> -> memref<8x128xf32, #tpu.memory_space<vmem>>
    %368 = tpu.memref_slice %arg9[%c2_i32_197] : memref<4x!tpu.dma_semaphore, #tpu.memory_space<semaphore_mem>> -> memref<1x!tpu.dma_semaphore, #tpu.memory_space<semaphore_mem>>
    %369 = tpu.memref_squeeze %368 : memref<1x!tpu.dma_semaphore, #tpu.memory_space<semaphore_mem>> -> memref<!tpu.dma_semaphore, #tpu.memory_space<semaphore_mem>>
    tpu.wait_dma2 semaphore(%369 : memref<!tpu.dma_semaphore, #tpu.memory_space<semaphore_mem>>) src(%365 : memref<8x128xf32, #tpu.memory_space<any>>) dst(%367 : memref<8x128xf32, #tpu.memory_space<vmem>>)
    %c2 = arith.constant 2 : index
    %c0_202 = arith.constant 0 : index
    %c0_203 = arith.constant 0 : index
    %370 = vector.load %arg8[%c2, %c0_202, %c0_203] : memref<4x8x128xf32, #tpu.memory_space<vmem>>, vector<1x8x128xf32>
    %371 = vector.shape_cast %370 : vector<1x8x128xf32> to vector<8x128xf32>
    %c32_i32_204 = arith.constant 32 : i32
    %372 = arith.muli %arg1, %c32_i32_204 : i32
    %c16_i32_205 = arith.constant 16 : i32
    %373 = arith.addi %372, %c16_i32_205 : i32
    %374 = tpu.assume_multiple %373, 8 : i32
    %375 = arith.index_cast %374 : i32 to index
    %c0_206 = arith.constant 0 : index
    %376 = vector.load %arg4[%375, %c0_206] : memref<32x128xf32, #tpu.memory_space<vmem>>, vector<8x128xf32>
    %377 = arith.addf %371, %376 : vector<8x128xf32>
    %cst_207 = arith.constant dense<0.000000e+00> : vector<8xf32>
    %378 = vector.multi_reduction <add>, %377, %cst_207 [1] : vector<8x128xf32> to vector<8xf32>
    %379 = vector.shape_cast %378 : vector<8xf32> to vector<8x1xf32>
    %cst_208 = arith.constant 1.280000e+02 : f32
    %380 = vector.broadcast %cst_208 : f32 to vector<8x1xf32>
    %381 = arith.divf %379, %380 : vector<8x1xf32>
    %382 = vector.broadcast %381 : vector<8x1xf32> to vector<8x128xf32>
    %383 = arith.subf %377, %382 : vector<8x128xf32>
    %384 = arith.mulf %383, %383 : vector<8x128xf32>
    %cst_209 = arith.constant dense<0.000000e+00> : vector<8xf32>
    %385 = vector.multi_reduction <add>, %384, %cst_209 [1] : vector<8x128xf32> to vector<8xf32>
    %386 = vector.shape_cast %385 : vector<8xf32> to vector<8x1xf32>
    %cst_210 = arith.constant 1.280000e+02 : f32
    %387 = vector.broadcast %cst_210 : f32 to vector<8x1xf32>
    %388 = arith.divf %386, %387 : vector<8x1xf32>
    %cst_211 = arith.constant 9.99999996E-13 : f32
    %389 = vector.broadcast %cst_211 : f32 to vector<8x1xf32>
    %390 = arith.addf %388, %389 : vector<8x1xf32>
    %391 = math.rsqrt %390 : vector<8x1xf32>
    %392 = vector.broadcast %391 : vector<8x1xf32> to vector<8x128xf32>
    %393 = arith.mulf %383, %392 : vector<8x128xf32>
    %394 = vector.broadcast %295 : vector<1x128xf32> to vector<8x128xf32>
    %395 = arith.mulf %393, %394 : vector<8x128xf32>
    %396 = vector.broadcast %296 : vector<1x128xf32> to vector<8x128xf32>
    %397 = arith.addf %395, %396 : vector<8x128xf32>
    %c16 = arith.constant 16 : index
    %c0_212 = arith.constant 0 : index
    %398 = vector.load %arg7[%c16, %c0_212] : memref<32x128xf32, #tpu.memory_space<vmem>>, vector<8x128xf32>
    tpu.vector_store %arg7[%c16, %c0_212], %397 {strides = array<i32>} : memref<32x128xf32, #tpu.memory_space<vmem>>, vector<8x128xf32>,
    %c3_i32_213 = arith.constant 3 : i32
    %c3_i32_214 = arith.constant 3 : i32
    %c0_i32_215 = arith.constant 0 : i32
    %c0_i32_216 = arith.constant 0 : i32
    %399 = tpu.memref_slice %arg3[%c0_i32_215, %c0_i32_216] : memref<96x128xf32, #tpu.memory_space<any>> -> memref<8x128xf32, #tpu.memory_space<any>>
    %c0_i32_217 = arith.constant 0 : i32
    %c0_i32_218 = arith.constant 0 : i32
    %400 = tpu.memref_slice %arg8[%c3_i32_213, %c0_i32_217, %c0_i32_218] : memref<4x8x128xf32, #tpu.memory_space<vmem>> -> memref<1x8x128xf32, #tpu.memory_space<vmem>>
    %401 = tpu.memref_squeeze %400 : memref<1x8x128xf32, #tpu.memory_space<vmem>> -> memref<8x128xf32, #tpu.memory_space<vmem>>
    %402 = tpu.memref_slice %arg9[%c3_i32_214] : memref<4x!tpu.dma_semaphore, #tpu.memory_space<semaphore_mem>> -> memref<1x!tpu.dma_semaphore, #tpu.memory_space<semaphore_mem>>
    %403 = tpu.memref_squeeze %402 : memref<1x!tpu.dma_semaphore, #tpu.memory_space<semaphore_mem>> -> memref<!tpu.dma_semaphore, #tpu.memory_space<semaphore_mem>>
    tpu.wait_dma2 semaphore(%403 : memref<!tpu.dma_semaphore, #tpu.memory_space<semaphore_mem>>) src(%399 : memref<8x128xf32, #tpu.memory_space<any>>) dst(%401 : memref<8x128xf32, #tpu.memory_space<vmem>>)
    %c3 = arith.constant 3 : index
    %c0_219 = arith.constant 0 : index
    %c0_220 = arith.constant 0 : index
    %404 = vector.load %arg8[%c3, %c0_219, %c0_220] : memref<4x8x128xf32, #tpu.memory_space<vmem>>, vector<1x8x128xf32>
    %405 = vector.shape_cast %404 : vector<1x8x128xf32> to vector<8x128xf32>
    %c32_i32_221 = arith.constant 32 : i32
    %406 = arith.muli %arg1, %c32_i32_221 : i32
    %c24_i32_222 = arith.constant 24 : i32
    %407 = arith.addi %406, %c24_i32_222 : i32
    %408 = tpu.assume_multiple %407, 8 : i32
    %409 = arith.index_cast %408 : i32 to index
    %c0_223 = arith.constant 0 : index
    %410 = vector.load %arg4[%409, %c0_223] : memref<32x128xf32, #tpu.memory_space<vmem>>, vector<8x128xf32>
    %411 = arith.addf %405, %410 : vector<8x128xf32>
    %cst_224 = arith.constant dense<0.000000e+00> : vector<8xf32>
    %412 = vector.multi_reduction <add>, %411, %cst_224 [1] : vector<8x128xf32> to vector<8xf32>
    %413 = vector.shape_cast %412 : vector<8xf32> to vector<8x1xf32>
    %cst_225 = arith.constant 1.280000e+02 : f32
    %414 = vector.broadcast %cst_225 : f32 to vector<8x1xf32>
    %415 = arith.divf %413, %414 : vector<8x1xf32>
    %416 = vector.broadcast %415 : vector<8x1xf32> to vector<8x128xf32>
    %417 = arith.subf %411, %416 : vector<8x128xf32>
    %418 = arith.mulf %417, %417 : vector<8x128xf32>
    %cst_226 = arith.constant dense<0.000000e+00> : vector<8xf32>
    %419 = vector.multi_reduction <add>, %418, %cst_226 [1] : vector<8x128xf32> to vector<8xf32>
    %420 = vector.shape_cast %419 : vector<8xf32> to vector<8x1xf32>
    %cst_227 = arith.constant 1.280000e+02 : f32
    %421 = vector.broadcast %cst_227 : f32 to vector<8x1xf32>
    %422 = arith.divf %420, %421 : vector<8x1xf32>
    %cst_228 = arith.constant 9.99999996E-13 : f32
    %423 = vector.broadcast %cst_228 : f32 to vector<8x1xf32>
    %424 = arith.addf %422, %423 : vector<8x1xf32>
    %425 = math.rsqrt %424 : vector<8x1xf32>
    %426 = vector.broadcast %425 : vector<8x1xf32> to vector<8x128xf32>
    %427 = arith.mulf %417, %426 : vector<8x128xf32>
    %428 = vector.broadcast %295 : vector<1x128xf32> to vector<8x128xf32>
    %429 = arith.mulf %427, %428 : vector<8x128xf32>
    %430 = vector.broadcast %296 : vector<1x128xf32> to vector<8x128xf32>
    %431 = arith.addf %429, %430 : vector<8x128xf32>
    %c24 = arith.constant 24 : index
    %c0_229 = arith.constant 0 : index
    %432 = vector.load %arg7[%c24, %c0_229] : memref<32x128xf32, #tpu.memory_space<vmem>>, vector<8x128xf32>
    tpu.vector_store %arg7[%c24, %c0_229], %431 {strides = array<i32>} : memref<32x128xf32, #tpu.memory_space<vmem>>, vector<8x128xf32>,
    return
  }
  func.func @transform_1(%arg0: i32, %arg1: i32, %arg2: memref<64xi32, #tpu.memory_space<smem>>) -> (i32, i32) {
    %c0_i32 = arith.constant 0 : i32
    %c0_i32_0 = arith.constant 0 : i32
    %c0_i32_1 = arith.constant 0 : i32
    return %c0_i32, %c0_i32_0 : i32, i32
  }
  func.func @transform_2(%arg0: i32, %arg1: i32, %arg2: memref<64xi32, #tpu.memory_space<smem>>) -> (i32, i32) {
    %c0_i32 = arith.constant 0 : i32
    %c0_i32_0 = arith.constant 0 : i32
    %c0_i32_1 = arith.constant 0 : i32
    return %c0_i32, %c0_i32_0 : i32, i32
  }
  func.func @transform_3(%arg0: i32, %arg1: i32, %arg2: memref<64xi32, #tpu.memory_space<smem>>) -> (i32, i32) {
    %c0_i32 = arith.constant 0 : i32
    %c0_i32_0 = arith.constant 0 : i32
    %c0_i32_1 = arith.constant 0 : i32
    return %c0_i32, %c0_i32_0 : i32, i32
  }
  func.func @transform_4(%arg0: i32, %arg1: i32, %arg2: memref<64xi32, #tpu.memory_space<smem>>) -> (i32, i32) {
    %c1_i32 = arith.constant 1 : i32
    %0 = arith.muli %arg0, %c1_i32 : i32
    %1 = arith.addi %0, %arg1 : i32
    %c0_i32 = arith.constant 0 : i32
    %c0_i32_0 = arith.constant 0 : i32
    return %1, %c0_i32 : i32, i32
  }
}

</mosaic_0001>

<llo_original>
// kernel: tpu_custom_call.1
$region0: #{tpu_custom_call.1}
  #allocation0 [shape = 'u32[]', space=smem, size = 0x4, offset = 0x4, fixed_abs, tag = 'smem constant byte address 0x4 - core index']
  #allocation1 [shape = 'u32[144,128]{1,0:T(1,128)}', space=vmem, size = 0x12000, scoped, tag = 'internal scratch']
  #allocation2 [shape = 'f32[4,8,128]{2,1,0:T(8,128)}', space=vmem, size = 0x4000, scoped, tag = 'scratch operand']
  #allocation3 [shape = 's32[4]{0}', space=sflag, size = 0x10, scoped, tag = 'scratch operand']
  #allocation4 [shape = 's32[1]{0}', space=sflag, size = 0x4, scoped, tag = 'scoped memory for tpu_custom_call.1']
  #allocation5 [shape = 'u8[512]{0}', space=smem, size = 0x200, scoped, tag = 'prefetched SMEM operand 0']
  #allocation10 [shape = 's32[]', space=sflag, size = 0x4, offset = 0, fixed_abs, tag = 'sflag constant byte address 0x0 - dummy sync flag']
  #allocation11 [shape = 's32[]', space=sflag, size = 0x4, offset = 0, fixed_abs, tag = 'sflag constant byte address 0x0 - dummy sync flag']
  #allocation12 [shape = 'u32[]', space=smem, size = 0x4, offset = 0x44, fixed_abs, tag = 'smem constant byte address 0x44 - assertion arg 0']
  #allocation13 [shape = 'u32[]', space=smem, size = 0x4, offset = 0x48, fixed_abs, tag = 'smem constant byte address 0x48 - assertion arg 1']
  #allocation14 [shape = 's32[]', space=sflag, size = 0x4, offset = 0, fixed_abs, tag = 'sflag constant byte address 0x0 - dummy sync flag']
  #allocation15 [shape = 's32[]', space=sflag, size = 0x4, offset = 0, fixed_abs, tag = 'sflag constant byte address 0x0 - dummy sync flag']
  #allocation16 [shape = 's32[]', space=sflag, size = 0x4, offset = 0, fixed_abs, tag = 'sflag constant byte address 0x0 - dummy sync flag']
  #allocation17 [shape = 's32[]', space=sflag, size = 0x4, offset = 0, fixed_abs, tag = 'sflag constant byte address 0x0 - dummy sync flag']
  #allocation18 [shape = 's32[]', space=sflag, size = 0x4, offset = 0, fixed_abs, tag = 'sflag constant byte address 0x0 - dummy sync flag']
  #allocation19 [shape = 's32[]', space=sflag, size = 0x4, offset = 0, fixed_abs, tag = 'sflag constant byte address 0x0 - dummy sync flag']
  #allocation20 [shape = 's32[]', space=sflag, size = 0x4, offset = 0, fixed_abs, tag = 'sflag constant byte address 0x0 - dummy sync flag']
  #allocation21 [shape = 's32[]', space=sflag, size = 0x4, offset = 0, fixed_abs, tag = 'sflag constant byte address 0x0 - dummy sync flag']
  #allocation22 [shape = 's32[]', space=sflag, size = 0x4, offset = 0, fixed_abs, tag = 'sflag constant byte address 0x0 - dummy sync flag']
  #allocation23 [shape = 's32[]', space=sflag, size = 0x4, offset = 0, fixed_abs, tag = 'sflag constant byte address 0x0 - dummy sync flag']
  #allocation24 [shape = 's32[]', space=sflag, size = 0x4, offset = 0, fixed_abs, tag = 'sflag constant byte address 0x0 - dummy sync flag']
  #allocation25 [shape = 's32[]', space=sflag, size = 0x4, offset = 0, fixed_abs, tag = 'sflag constant byte address 0x0 - dummy sync flag']
  #allocation26 [shape = 's32[]', space=sflag, size = 0x4, offset = 0, fixed_abs, tag = 'sflag constant byte address 0x0 - dummy sync flag']
  #allocation27 [shape = 's32[]', space=sflag, size = 0x4, offset = 0, fixed_abs, tag = 'sflag constant byte address 0x0 - dummy sync flag']
  #allocation28 [shape = 's32[]', space=sflag, size = 0x4, offset = 0, fixed_abs, tag = 'sflag constant byte address 0x0 - dummy sync flag']
  #allocation29 [shape = 's32[]', space=sflag, size = 0x4, offset = 0, fixed_abs, tag = 'sflag constant byte address 0x0 - dummy sync flag']
  #allocation30 [shape = 's32[]', space=sflag, size = 0x4, offset = 0, fixed_abs, tag = 'sflag constant byte address 0x0 - dummy sync flag']
  #allocation31 [shape = 's32[]', space=sflag, size = 0x4, offset = 0, fixed_abs, tag = 'sflag constant byte address 0x0 - dummy sync flag']
  #allocation32 [shape = 's32[]', space=sflag, size = 0x4, offset = 0, fixed_abs, tag = 'sflag constant byte address 0x0 - dummy sync flag']
  #allocation33 [shape = 's32[]', space=sflag, size = 0x4, offset = 0, fixed_abs, tag = 'sflag constant byte address 0x0 - dummy sync flag']
  #allocation34 [shape = 's32[]', space=sflag, size = 0x4, offset = 0, fixed_abs, tag = 'sflag constant byte address 0x0 - dummy sync flag']
  #allocation35 [shape = 's32[]', space=sflag, size = 0x4, offset = 0, fixed_abs, tag = 'sflag constant byte address 0x0 - dummy sync flag']
  #allocation36 [shape = 's32[]', space=sflag, size = 0x4, offset = 0, fixed_abs, tag = 'sflag constant byte address 0x0 - dummy sync flag']
  #allocation37 [shape = 's32[]', space=sflag, size = 0x4, offset = 0, fixed_abs, tag = 'sflag constant byte address 0x0 - dummy sync flag']
  #allocation38 [shape = 's32[]', space=sflag, size = 0x4, offset = 0, fixed_abs, tag = 'sflag constant byte address 0x0 - dummy sync flag']
  #allocation39 [shape = 's32[]', space=sflag, size = 0x4, offset = 0, fixed_abs, tag = 'sflag constant byte address 0x0 - dummy sync flag']
  #allocation40 [shape = 's32[]', space=sflag, size = 0x4, offset = 0, fixed_abs, tag = 'sflag constant byte address 0x0 - dummy sync flag']
  #allocation41 [shape = 's32[]', space=sflag, size = 0x4, offset = 0, fixed_abs, tag = 'sflag constant byte address 0x0 - dummy sync flag']
  #allocation42 [shape = 's32[]', space=sflag, size = 0x4, offset = 0, fixed_abs, tag = 'sflag constant byte address 0x0 - dummy sync flag']
  #allocation43 [shape = 's32[]', space=sflag, size = 0x4, offset = 0, fixed_abs, tag = 'sflag constant byte address 0x0 - dummy sync flag']
  #allocation44 [shape = 's32[]', space=sflag, size = 0x4, offset = 0, fixed_abs, tag = 'sflag constant byte address 0x0 - dummy sync flag']
  #allocation45 [shape = 's32[]', space=sflag, size = 0x4, offset = 0, fixed_abs, tag = 'sflag constant byte address 0x0 - dummy sync flag']
  #allocation46 [shape = 's32[]', space=sflag, size = 0x4, offset = 0, fixed_abs, tag = 'sflag constant byte address 0x0 - dummy sync flag']
  #allocation47 [shape = 's32[]', space=sflag, size = 0x4, offset = 0, fixed_abs, tag = 'sflag constant byte address 0x0 - dummy sync flag']
  #allocation48 [shape = 's32[]', space=sflag, size = 0x4, offset = 0, fixed_abs, tag = 'sflag constant byte address 0x0 - dummy sync flag']
  #allocation49 [shape = 's32[]', space=sflag, size = 0x4, offset = 0, fixed_abs, tag = 'sflag constant byte address 0x0 - dummy sync flag']
  #allocation50 [shape = 's32[]', space=sflag, size = 0x4, offset = 0, fixed_abs, tag = 'sflag constant byte address 0x0 - dummy sync flag']
  #allocation51 [shape = 's32[]', space=sflag, size = 0x4, offset = 0, fixed_abs, tag = 'sflag constant byte address 0x0 - dummy sync flag']
  #allocation52 [shape = 's32[]', space=sflag, size = 0x4, offset = 0, fixed_abs, tag = 'sflag constant byte address 0x0 - dummy sync flag']
  #allocation53 [shape = 's32[]', space=sflag, size = 0x4, offset = 0, fixed_abs, tag = 'sflag constant byte address 0x0 - dummy sync flag']
  #allocation54 [shape = 's32[]', space=sflag, size = 0x4, offset = 0, fixed_abs, tag = 'sflag constant byte address 0x0 - dummy sync flag']
  #allocation55 [shape = 's32[]', space=sflag, size = 0x4, offset = 0, fixed_abs, tag = 'sflag constant byte address 0x0 - dummy sync flag']
  #allocation56 [shape = 's32[]', space=sflag, size = 0x4, offset = 0, fixed_abs, tag = 'sflag constant byte address 0x0 - dummy sync flag']
  #allocation57 [shape = 's32[]', space=sflag, size = 0x4, offset = 0, fixed_abs, tag = 'sflag constant byte address 0x0 - dummy sync flag']
  #allocation58 [shape = 's32[]', space=sflag, size = 0x4, offset = 0, fixed_abs, tag = 'sflag constant byte address 0x0 - dummy sync flag']
  #allocation59 [shape = 's32[]', space=sflag, size = 0x4, offset = 0, fixed_abs, tag = 'sflag constant byte address 0x0 - dummy sync flag']
  #allocation60 [shape = 's32[]', space=sflag, size = 0x4, offset = 0, fixed_abs, tag = 'sflag constant byte address 0x0 - dummy sync flag']
  #allocation61 [shape = 's32[]', space=sflag, size = 0x4, offset = 0, fixed_abs, tag = 'sflag constant byte address 0x0 - dummy sync flag']
  #allocation62 [shape = 's32[]', space=sflag, size = 0x4, offset = 0, fixed_abs, tag = 'sflag constant byte address 0x0 - dummy sync flag']
  #allocation63 [shape = 's32[]', space=sflag, size = 0x4, offset = 0, fixed_abs, tag = 'sflag constant byte address 0x0 - dummy sync flag']
  #allocation64 [shape = 's32[]', space=sflag, size = 0x4, offset = 0, fixed_abs, tag = 'sflag constant byte address 0x0 - dummy sync flag']
  #allocation65 [shape = 's32[]', space=sflag, size = 0x4, offset = 0, fixed_abs, tag = 'sflag constant byte address 0x0 - dummy sync flag']
  #allocation66 [shape = 's32[]', space=sflag, size = 0x4, offset = 0, fixed_abs, tag = 'sflag constant byte address 0x0 - dummy sync flag']
  #allocation67 [shape = 's32[]', space=sflag, size = 0x4, offset = 0, fixed_abs, tag = 'sflag constant byte address 0x0 - dummy sync flag']
  #allocation68 [shape = 's32[]', space=sflag, size = 0x4, offset = 0, fixed_abs, tag = 'sflag constant byte address 0x0 - dummy sync flag']
  #allocation69 [shape = 's32[]', space=sflag, size = 0x4, offset = 0, fixed_abs, tag = 'sflag constant byte address 0x0 - dummy sync flag']
  #allocation70 [shape = 's32[]', space=sflag, size = 0x4, offset = 0, fixed_abs, tag = 'sflag constant byte address 0x0 - dummy sync flag']
  #allocation71 [shape = 's32[]', space=sflag, size = 0x4, offset = 0, fixed_abs, tag = 'sflag constant byte address 0x0 - dummy sync flag']
  #allocation72 [shape = 's32[]', space=sflag, size = 0x4, offset = 0, fixed_abs, tag = 'sflag constant byte address 0x0 - dummy sync flag']
  #allocation73 [shape = 's32[]', space=sflag, size = 0x4, offset = 0, fixed_abs, tag = 'sflag constant byte address 0x0 - dummy sync flag']
  #allocation74 [shape = 's32[]', space=sflag, size = 0x4, offset = 0, fixed_abs, tag = 'sflag constant byte address 0x0 - dummy sync flag']
  #allocation75 [shape = 's32[]', space=sflag, size = 0x4, offset = 0, fixed_abs, tag = 'sflag constant byte address 0x0 - dummy sync flag']
  %s0 = inlined_call_operand.hbm [shape: s32[64], index: 0, kind: input, shape index: {}]
  %s1 = inlined_call_operand.hbm [shape: f32[96,128], index: 1, kind: input, shape index: {}]
  %s2 = inlined_call_operand.hbm [shape: f32[32,128], index: 2, kind: input, shape index: {}]
  %s3 = inlined_call_operand.vmem [shape: f32[1,128], index: 3, kind: input, shape index: {}]
  %s4 = inlined_call_operand.vmem [shape: f32[1,128], index: 4, kind: input, shape index: {}]
  %s5 = inlined_call_operand.hbm [shape: f32[64,128], index: 5, kind: output, shape index: {}]
  %s6 = sld [smem:[#allocation0]]
  $region177: #{tpu_custom_call.1} parent=0
    _
  %s8 = ssub.s32 1, %s6
  %s9 = scalar_select 0, %s8, %s6
  %11 = dma.hbm_to_smem %s0, 16, [#allocation5], [#allocation4]
  %12 = dma.done [#allocation4], 16
  %13 = sfence
  $region1: #{tpu_custom_call.1} parent=0
    #allocation6 [shape = 'u8[16384]{0}', space=vmem, size = 0x4000, scoped, tag = 'input window, operand 2, single buffered']
    #allocation7 [shape = 's32[2]{0}', space=sflag, size = 0x8, scoped, tag = 'scoped memory for tpu_custom_call.1']
    #allocation8 [shape = 's32[2]{0}', space=sflag, size = 0x8, scoped, tag = 'scoped memory for tpu_custom_call.1']
    #allocation9 [shape = 'u8[32768]{0}', space=vmem, size = 0x8000, scoped, tag = 'output window, operand 0']
    %14 = vsyncpa [#allocation7], 0
    %15 = vsyncpa [#allocation8], 0
    %s16 = scalar_lea.sflag [#allocation8], 1
    %17 = vsyncpa %s16, 0
    loop: start=0, step=1, limit=4
    $region2: #{tpu_custom_call.1} parent=1 // loop_pre_header
      _
    $region3: #{tpu_custom_call.1} parent=1 // loop_header
      %s19 = sphi 0, %s23
      %p20 = scmp.ge.s32.totalorder %s19, 4
      %s26 = sphi 0, %s38
      %s27 = sphi 0, %s34
      %s28 = sphi 0, %s26
      %s29 = sphi 0, %s27
      %s30 = sphi 0, %s28
      %s31 = sphi 0, %s29
      %s39 = sphi 0, %s39
      %s41 = sphi 0, %s39
      %s42 = sphi 0, %s41
      %s56 = sphi 0, %s42
      %s60 = sphi 0, %s60
      %s62 = sphi 0, %s60
      %s63 = sphi 0, %s62
      %s77 = sphi 0, %s63
      %s81 = sphi 0, %s81
      %s83 = sphi 0, %s81
      %s84 = sphi 0, %s83
      %s98 = sphi 0, %s84
      %s106 = sphi 0, %s108
      %s109 = sphi 0, %s106
      %s110 = sphi 0, %s109
      %s126 = sphi 0, %s110
    $region4: #{tpu_custom_call.1} parent=1 // loop_header_branch
      %22 = sbr.rel (%p20) target = $region8
    $region5: #{tpu_custom_call.1} parent=1 // loop_body
      %s24 = ssub.s32 %s19, 1
      %s25 = ssub.s32 %s19, 2
      %s32 = sadd.s32 1, %s27
      %p33 = scmp.ge.s32.totalorder %s32, 1
      %s34 = scalar_select %p33, 0, %s32
      %s35 = sadd.s32 1, %s26
      %s36 = scalar_select %p33, %s35, %s26
      %p37 = scmp.ge.s32.totalorder %s36, 2
      %s38 = scalar_select %p37, 0, %s36
      %s40 = sadd.s32 %s39, 1
      %p43 = scmp.eq.s32.totalorder %s19, 1
      %p44 = scmp.ne.s32.totalorder %s39, %s41
      %p45 = scmp.eq.s32.totalorder %s19, 0
      %p46 = por %p44, %p45
      %p47 = scmp.ne.s32.totalorder %s39, %s41
      %p48 = scmp.eq.s32.totalorder %s24, 1
      %p49 = por %p47, %p48
      %p50 = scmp.ne.s32.totalorder %s41, %s42
      %p51 = scmp.eq.s32.totalorder %s24, 0
      %p52 = por %p50, %p51
      %p53 = scmp.ne.s32.totalorder %s41, %s42
      %p54 = scmp.eq.s32.totalorder %s25, 1
      %p55 = por %p53, %p54
      %p57 = scmp.ne.s32.totalorder %s42, %s56
      %p58 = scmp.eq.s32.totalorder %s25, 0
      %p59 = por %p57, %p58
      %s61 = sadd.s32 %s60, 1
      %p64 = scmp.eq.s32.totalorder %s19, 1
      %p65 = scmp.ne.s32.totalorder %s60, %s62
      %p66 = scmp.eq.s32.totalorder %s19, 0
      %p67 = por %p65, %p66
      %p68 = scmp.ne.s32.totalorder %s60, %s62
      %p69 = scmp.eq.s32.totalorder %s24, 1
      %p70 = por %p68, %p69
      %p71 = scmp.ne.s32.totalorder %s62, %s63
      %p72 = scmp.eq.s32.totalorder %s24, 0
      %p73 = por %p71, %p72
      %p74 = scmp.ne.s32.totalorder %s62, %s63
      %p75 = scmp.eq.s32.totalorder %s25, 1
      %p76 = por %p74, %p75
      %p78 = scmp.ne.s32.totalorder %s63, %s77
      %p79 = scmp.eq.s32.totalorder %s25, 0
      %p80 = por %p78, %p79
      %s82 = sadd.s32 %s81, 1
      %p85 = scmp.eq.s32.totalorder %s19, 1
      %p86 = scmp.ne.s32.totalorder %s81, %s83
      %p87 = scmp.eq.s32.totalorder %s19, 0
      %p88 = por %p86, %p87
      %p89 = scmp.ne.s32.totalorder %s81, %s83
      %p90 = scmp.eq.s32.totalorder %s24, 1
      %p91 = por %p89, %p90
      %p92 = scmp.ne.s32.totalorder %s83, %s84
      %p93 = scmp.eq.s32.totalorder %s24, 0
      %p94 = por %p92, %p93
      %p95 = scmp.ne.s32.totalorder %s83, %s84
      %p96 = scmp.eq.s32.totalorder %s25, 1
      %p97 = por %p95, %p96
      %p99 = scmp.ne.s32.totalorder %s84, %s98
      %p100 = scmp.eq.s32.totalorder %s25, 0
      %p101 = por %p99, %p100
      %s102 = sadd.s32 %s26, %s27
      %s103 = sadd.s32 %s38, %s34
      %s104 = ssub.s32 %s102, %s103
      %p105 = scmp.eq.s32.totalorder %s104, 0
      %s107 = sadd.s32 %s106, 1
      %s108 = scalar_select %p105, %s106, %s107
      %p111 = pneg %p105
      %p112 = scmp.eq.s32.totalorder %s19, 1
      %p113 = por %p111, %p112
      %p114 = scmp.ne.s32.totalorder %s106, %s109
      %p115 = scmp.eq.s32.totalorder %s19, 0
      %p116 = por %p114, %p115
      %p117 = scmp.ne.s32.totalorder %s106, %s109
      %p118 = scmp.eq.s32.totalorder %s24, 1
      %p119 = por %p117, %p118
      %p120 = scmp.ne.s32.totalorder %s109, %s110
      %p121 = scmp.eq.s32.totalorder %s24, 0
      %p122 = por %p120, %p121
      %p123 = scmp.ne.s32.totalorder %s109, %s110
      %p124 = scmp.eq.s32.totalorder %s25, 1
      %p125 = por %p123, %p124
      %p127 = scmp.ne.s32.totalorder %s110, %s126
      %p128 = scmp.eq.s32.totalorder %s25, 0
      %p129 = por %p127, %p128
      %p130 = scmp.le.s32.totalorder 1, %s19
      %p131 = scmp.lt.s32.totalorder %s19, 3
      %p132 = pnand %p130, %p131
      %p133 = pneg %p132
      // Predicated region
      $region9: #{tpu_custom_call.1} parent=5 // pred_check
        _
      $region10: #{tpu_custom_call.1} parent=5 // pred_check_branch
        %135 = sbr.rel (%p132) target = $region12
      $region11: #{tpu_custom_call.1} parent=5 // pred_region
        %s136 = ssub.s32 %s19, 1
        // Predicated region
        $region13: #{tpu_custom_call.1} parent=11 // pred_check
          %p137 = pneg %p52
        $region14: #{tpu_custom_call.1} parent=11 // pred_check_branch
          %139 = sbr.rel (%p137) target = $region16
        $region15: #{tpu_custom_call.1} parent=11 // pred_region
          %s141 = ssub.s32 512, 512
          %142 = vsyncadd [#allocation7], %s141
          %s143 = sshll.u32 [#allocation6], 4
          %s144 = int_to_ptr.vmem [resolvable:$true] %s143
          %149 = dma.hbm_to_vmem [thread:$0]  %s2, 512, %s144, [#allocation7], 128, 128, 8
        $region16: #{tpu_custom_call.1} parent=11 // pred_fallthru
          _
        // Predicated region
        $region17: #{tpu_custom_call.1} parent=11 // pred_check
          %p150 = pneg %p73
        $region18: #{tpu_custom_call.1} parent=11 // pred_check_branch
          %152 = sbr.rel (%p150) target = $region20
        $region19: #{tpu_custom_call.1} parent=11 // pred_region
          _
        $region20: #{tpu_custom_call.1} parent=11 // pred_fallthru
          _
        // Predicated region
        $region21: #{tpu_custom_call.1} parent=11 // pred_check
          %p153 = pneg %p94
        $region22: #{tpu_custom_call.1} parent=11 // pred_check_branch
          %155 = sbr.rel (%p153) target = $region24
        $region23: #{tpu_custom_call.1} parent=11 // pred_region
          _
        $region24: #{tpu_custom_call.1} parent=11 // pred_fallthru
          _
      $region12: #{tpu_custom_call.1} parent=5 // pred_fallthru
        _
      %p156 = scmp.lt.s32.totalorder %s19, 2
      // Predicated region
      $region25: #{tpu_custom_call.1} parent=5 // pred_check
        %p157 = pneg %p156
      $region26: #{tpu_custom_call.1} parent=5 // pred_check_branch
        %159 = sbr.rel (%p157) target = $region28
      $region27: #{tpu_custom_call.1} parent=5 // pred_region
        _
      $region28: #{tpu_custom_call.1} parent=5 // pred_fallthru
        _
      %p160 = scmp.le.s32.totalorder 1, %s19
      %p161 = scmp.lt.s32.totalorder %s19, 3
      %p162 = pnand %p160, %p161
      %p163 = pneg %p162
      // Predicated region
      $region29: #{tpu_custom_call.1} parent=5 // pred_check
        _
      $region30: #{tpu_custom_call.1} parent=5 // pred_check_branch
        %165 = sbr.rel (%p162) target = $region32
      $region31: #{tpu_custom_call.1} parent=5 // pred_region
        %s166 = ssub.s32 %s19, 1
        // Predicated region
        $region33: #{tpu_custom_call.1} parent=31 // pred_check
          %p167 = pneg %p52
        $region34: #{tpu_custom_call.1} parent=31 // pred_check_branch
          %169 = sbr.rel (%p167) target = $region36
        $region35: #{tpu_custom_call.1} parent=31 // pred_region
          %170 = dma.done [#allocation7], 512
        $region36: #{tpu_custom_call.1} parent=31 // pred_fallthru
          _
        %p171 = pneg %p52
        %p172 = pneg %p49
        %p173 = pneg %p73
        %p174 = pneg %p70
        %p175 = pneg %p94
        %p176 = pneg %p91
        %p177 = pneg %p122
        %p178 = pneg %p119
        %s179 = sand.u32 %s109, 1
        %s180 = scalar_lea.sflag [#allocation8], %s179
        %s181 = sand.u32 %s109, 1
        %s182 = smul.addr %s181, 32
        %s183 = scalar_lea.vmem [#allocation9], %s182
        %s184 = sadd.s32 %s28, %s29
        %s185 = smul.u32 4, %s184
        %s186 = smul.u32 %s28, 32
        %s187 = smul.u32 %s29, 32
        %s188 = sadd.s32 %s186, %s187
        %s189 = sld [smem:[#allocation5 + %s188]]
        %s190 = smul.addr %s189, 16
        %s191 = scalar_lea.hbm %s1, %s190
        // Predicated region
        $region37: #{tpu_custom_call.1} parent=31 // pred_check
          _
        $region38: #{tpu_custom_call.1} parent=31 // pred_check_branch
          %193 = sbr.rel target = $region40
        $region39: #{tpu_custom_call.1} parent=31 // pred_region
          %194 = sst [smem:[#allocation12]] [#allocation11]
          %195 = sst [smem:[#allocation13]] [#allocation10]
        $region40: #{tpu_custom_call.1} parent=31 // pred_fallthru
          _
        %197 = shalt.err (0)
        %s199 = sshll.u32 [#allocation2], 4
        %s200 = int_to_ptr.vmem [resolvable:$true] %s199
        %202 = dma.hbm_to_vmem [thread:$0]  %s191, 16, %s200, [#allocation3]
        %s203 = sadd.s32 %s188, 1
        %s204 = sld [smem:[#allocation5 + %s203]]
        %s205 = smul.addr %s204, 16
        %s206 = scalar_lea.hbm %s1, %s205
        %s207 = scalar_lea.vmem [#allocation2], 1
        // Predicated region
        $region41: #{tpu_custom_call.1} parent=31 // pred_check
          _
        $region42: #{tpu_custom_call.1} parent=31 // pred_check_branch
          %209 = sbr.rel target = $region44
        $region43: #{tpu_custom_call.1} parent=31 // pred_region
          %210 = sst [smem:[#allocation12]] [#allocation15]
          %211 = sst [smem:[#allocation13]] [#allocation14]
        $region44: #{tpu_custom_call.1} parent=31 // pred_fallthru
          _
        %213 = shalt.err (0)
        %s215 = sshll.u32 %s207, 4
        %s216 = int_to_ptr.vmem [resolvable:$true] %s215
        %218 = dma.hbm_to_vmem [thread:$0]  %s206, 16, %s216, [#allocation3]
        %s219 = sadd.s32 %s188, 2
        %s220 = sld [smem:[#allocation5 + %s219]]
        %s221 = smul.addr %s220, 16
        %s222 = scalar_lea.hbm %s1, %s221
        %s223 = scalar_lea.vmem [#allocation2], 2
        // Predicated region
        $region45: #{tpu_custom_call.1} parent=31 // pred_check
          _
        $region46: #{tpu_custom_call.1} parent=31 // pred_check_branch
          %225 = sbr.rel target = $region48
        $region47: #{tpu_custom_call.1} parent=31 // pred_region
          %226 = sst [smem:[#allocation12]] [#allocation17]
          %227 = sst [smem:[#allocation13]] [#allocation16]
        $region48: #{tpu_custom_call.1} parent=31 // pred_fallthru
          _
        %229 = shalt.err (0)
        %s231 = sshll.u32 %s223, 4
        %s232 = int_to_ptr.vmem [resolvable:$true] %s231
        %234 = dma.hbm_to_vmem [thread:$0]  %s222, 16, %s232, [#allocation3]
        %s235 = sadd.s32 %s188, 3
        %s236 = sld [smem:[#allocation5 + %s235]]
        %s237 = smul.addr %s236, 16
        %s238 = scalar_lea.hbm %s1, %s237
        %s239 = scalar_lea.vmem [#allocation2], 3
        // Predicated region
        $region49: #{tpu_custom_call.1} parent=31 // pred_check
          _
        $region50: #{tpu_custom_call.1} parent=31 // pred_check_branch
          %241 = sbr.rel target = $region52
        $region51: #{tpu_custom_call.1} parent=31 // pred_region
          %242 = sst [smem:[#allocation12]] [#allocation19]
          %243 = sst [smem:[#allocation13]] [#allocation18]
        $region52: #{tpu_custom_call.1} parent=31 // pred_fallthru
          _
        %245 = shalt.err (0)
        %s247 = sshll.u32 %s239, 4
        %s248 = int_to_ptr.vmem [resolvable:$true] %s247
        %250 = dma.hbm_to_vmem [thread:$0]  %s238, 16, %s248, [#allocation3]
        %s251 = sadd.s32 %s188, 4
        %s252 = sld [smem:[#allocation5 + %s251]]
        %s253 = smul.addr %s252, 16
        %s254 = scalar_lea.hbm %s1, %s253
        %s255 = scalar_lea.vmem [#allocation2], 4
        // Predicated region
        $region53: #{tpu_custom_call.1} parent=31 // pred_check
          _
        $region54: #{tpu_custom_call.1} parent=31 // pred_check_branch
          %257 = sbr.rel target = $region56
        $region55: #{tpu_custom_call.1} parent=31 // pred_region
          %258 = sst [smem:[#allocation12]] [#allocation21]
          %259 = sst [smem:[#allocation13]] [#allocation20]
        $region56: #{tpu_custom_call.1} parent=31 // pred_fallthru
          _
        %261 = shalt.err (0)
        %s263 = sshll.u32 %s255, 4
        %s264 = int_to_ptr.vmem [resolvable:$true] %s263
        %266 = dma.hbm_to_vmem [thread:$0]  %s254, 16, %s264, [#allocation3]
        %s267 = sadd.s32 %s188, 5
        %s268 = sld [smem:[#allocation5 + %s267]]
        %s269 = smul.addr %s268, 16
        %s270 = scalar_lea.hbm %s1, %s269
        %s271 = scalar_lea.vmem [#allocation2], 5
        // Predicated region
        $region57: #{tpu_custom_call.1} parent=31 // pred_check
          _
        $region58: #{tpu_custom_call.1} parent=31 // pred_check_branch
          %273 = sbr.rel target = $region60
        $region59: #{tpu_custom_call.1} parent=31 // pred_region
          %274 = sst [smem:[#allocation12]] [#allocation23]
          %275 = sst [smem:[#allocation13]] [#allocation22]
        $region60: #{tpu_custom_call.1} parent=31 // pred_fallthru
          _
        %277 = shalt.err (0)
        %s279 = sshll.u32 %s271, 4
        %s280 = int_to_ptr.vmem [resolvable:$true] %s279
        %282 = dma.hbm_to_vmem [thread:$0]  %s270, 16, %s280, [#allocation3]
        %s283 = sadd.s32 %s188, 6
        %s284 = sld [smem:[#allocation5 + %s283]]
        %s285 = smul.addr %s284, 16
        %s286 = scalar_lea.hbm %s1, %s285
        %s287 = scalar_lea.vmem [#allocation2], 6
        // Predicated region
        $region61: #{tpu_custom_call.1} parent=31 // pred_check
          _
        $region62: #{tpu_custom_call.1} parent=31 // pred_check_branch
          %289 = sbr.rel target = $region64
        $region63: #{tpu_custom_call.1} parent=31 // pred_region
          %290 = sst [smem:[#allocation12]] [#allocation25]
          %291 = sst [smem:[#allocation13]] [#allocation24]
        $region64: #{tpu_custom_call.1} parent=31 // pred_fallthru
          _
        %293 = shalt.err (0)
        %s295 = sshll.u32 %s287, 4
        %s296 = int_to_ptr.vmem [resolvable:$true] %s295
        %298 = dma.hbm_to_vmem [thread:$0]  %s286, 16, %s296, [#allocation3]
        %s299 = sadd.s32 %s188, 7
        %s300 = sld [smem:[#allocation5 + %s299]]
        %s301 = smul.addr %s300, 16
        %s302 = scalar_lea.hbm %s1, %s301
        %s303 = scalar_lea.vmem [#allocation2], 7
        // Predicated region
        $region65: #{tpu_custom_call.1} parent=31 // pred_check
          _
        $region66: #{tpu_custom_call.1} parent=31 // pred_check_branch
          %305 = sbr.rel target = $region68
        $region67: #{tpu_custom_call.1} parent=31 // pred_region
          %306 = sst [smem:[#allocation12]] [#allocation27]
          %307 = sst [smem:[#allocation13]] [#allocation26]
        $region68: #{tpu_custom_call.1} parent=31 // pred_fallthru
          _
        %309 = shalt.err (0)
        %s311 = sshll.u32 %s303, 4
        %s312 = int_to_ptr.vmem [resolvable:$true] %s311
        %314 = dma.hbm_to_vmem [thread:$0]  %s302, 16, %s312, [#allocation3]
        %s315 = sadd.s32 %s188, 8
        %s316 = sld [smem:[#allocation5 + %s315]]
        %s317 = smul.addr %s316, 16
        %s318 = scalar_lea.hbm %s1, %s317
        %s319 = scalar_lea.vmem [#allocation2], 8
        %s320 = scalar_lea.sflag [#allocation3], 1
        // Predicated region
        $region69: #{tpu_custom_call.1} parent=31 // pred_check
          _
        $region70: #{tpu_custom_call.1} parent=31 // pred_check_branch
          %322 = sbr.rel target = $region72
        $region71: #{tpu_custom_call.1} parent=31 // pred_region
          %323 = sst [smem:[#allocation12]] [#allocation29]
          %324 = sst [smem:[#allocation13]] [#allocation28]
        $region72: #{tpu_custom_call.1} parent=31 // pred_fallthru
          _
        %326 = shalt.err (0)
        %s328 = sshll.u32 %s319, 4
        %s329 = int_to_ptr.vmem [resolvable:$true] %s328
        %331 = dma.hbm_to_vmem [thread:$0]  %s318, 16, %s329, %s320
        %s332 = sadd.s32 %s188, 9
        %s333 = sld [smem:[#allocation5 + %s332]]
        %s334 = smul.addr %s333, 16
        %s335 = scalar_lea.hbm %s1, %s334
        %s336 = scalar_lea.vmem [#allocation2], 9
        // Predicated region
        $region73: #{tpu_custom_call.1} parent=31 // pred_check
          _
        $region74: #{tpu_custom_call.1} parent=31 // pred_check_branch
          %338 = sbr.rel target = $region76
        $region75: #{tpu_custom_call.1} parent=31 // pred_region
          %339 = sst [smem:[#allocation12]] [#allocation31]
          %340 = sst [smem:[#allocation13]] [#allocation30]
        $region76: #{tpu_custom_call.1} parent=31 // pred_fallthru
          _
        %342 = shalt.err (0)
        %s344 = sshll.u32 %s336, 4
        %s345 = int_to_ptr.vmem [resolvable:$true] %s344
        %347 = dma.hbm_to_vmem [thread:$0]  %s335, 16, %s345, %s320
        %s348 = sadd.s32 %s188, 10
        %s349 = sld [smem:[#allocation5 + %s348]]
        %s350 = smul.addr %s349, 16
        %s351 = scalar_lea.hbm %s1, %s350
        %s352 = scalar_lea.vmem [#allocation2], 10
        // Predicated region
        $region77: #{tpu_custom_call.1} parent=31 // pred_check
          _
        $region78: #{tpu_custom_call.1} parent=31 // pred_check_branch
          %354 = sbr.rel target = $region80
        $region79: #{tpu_custom_call.1} parent=31 // pred_region
          %355 = sst [smem:[#allocation12]] [#allocation33]
          %356 = sst [smem:[#allocation13]] [#allocation32]
        $region80: #{tpu_custom_call.1} parent=31 // pred_fallthru
          _
        %358 = shalt.err (0)
        %s360 = sshll.u32 %s352, 4
        %s361 = int_to_ptr.vmem [resolvable:$true] %s360
        %363 = dma.hbm_to_vmem [thread:$0]  %s351, 16, %s361, %s320
        %s364 = sadd.s32 %s188, 11
        %s365 = sld [smem:[#allocation5 + %s364]]
        %s366 = smul.addr %s365, 16
        %s367 = scalar_lea.hbm %s1, %s366
        %s368 = scalar_lea.vmem [#allocation2], 11
        // Predicated region
        $region81: #{tpu_custom_call.1} parent=31 // pred_check
          _
        $region82: #{tpu_custom_call.1} parent=31 // pred_check_branch
          %370 = sbr.rel target = $region84
        $region83: #{tpu_custom_call.1} parent=31 // pred_region
          %371 = sst [smem:[#allocation12]] [#allocation35]
          %372 = sst [smem:[#allocation13]] [#allocation34]
        $region84: #{tpu_custom_call.1} parent=31 // pred_fallthru
          _
        %374 = shalt.err (0)
        %s376 = sshll.u32 %s368, 4
        %s377 = int_to_ptr.vmem [resolvable:$true] %s376
        %379 = dma.hbm_to_vmem [thread:$0]  %s367, 16, %s377, %s320
        %s380 = sadd.s32 %s188, 12
        %s381 = sld [smem:[#allocation5 + %s380]]
        %s382 = smul.addr %s381, 16
        %s383 = scalar_lea.hbm %s1, %s382
        %s384 = scalar_lea.vmem [#allocation2], 12
        // Predicated region
        $region85: #{tpu_custom_call.1} parent=31 // pred_check
          _
        $region86: #{tpu_custom_call.1} parent=31 // pred_check_branch
          %386 = sbr.rel target = $region88
        $region87: #{tpu_custom_call.1} parent=31 // pred_region
          %387 = sst [smem:[#allocation12]] [#allocation37]
          %388 = sst [smem:[#allocation13]] [#allocation36]
        $region88: #{tpu_custom_call.1} parent=31 // pred_fallthru
          _
        %390 = shalt.err (0)
        %s392 = sshll.u32 %s384, 4
        %s393 = int_to_ptr.vmem [resolvable:$true] %s392
        %395 = dma.hbm_to_vmem [thread:$0]  %s383, 16, %s393, %s320
        %s396 = sadd.s32 %s188, 13
        %s397 = sld [smem:[#allocation5 + %s396]]
        %s398 = smul.addr %s397, 16
        %s399 = scalar_lea.hbm %s1, %s398
        %s400 = scalar_lea.vmem [#allocation2], 13
        // Predicated region
        $region89: #{tpu_custom_call.1} parent=31 // pred_check
          _
        $region90: #{tpu_custom_call.1} parent=31 // pred_check_branch
          %402 = sbr.rel target = $region92
        $region91: #{tpu_custom_call.1} parent=31 // pred_region
          %403 = sst [smem:[#allocation12]] [#allocation39]
          %404 = sst [smem:[#allocation13]] [#allocation38]
        $region92: #{tpu_custom_call.1} parent=31 // pred_fallthru
          _
        %406 = shalt.err (0)
        %s408 = sshll.u32 %s400, 4
        %s409 = int_to_ptr.vmem [resolvable:$true] %s408
        %411 = dma.hbm_to_vmem [thread:$0]  %s399, 16, %s409, %s320
        %s412 = sadd.s32 %s188, 14
        %s413 = sld [smem:[#allocation5 + %s412]]
        %s414 = smul.addr %s413, 16
        %s415 = scalar_lea.hbm %s1, %s414
        %s416 = scalar_lea.vmem [#allocation2], 14
        // Predicated region
        $region93: #{tpu_custom_call.1} parent=31 // pred_check
          _
        $region94: #{tpu_custom_call.1} parent=31 // pred_check_branch
          %418 = sbr.rel target = $region96
        $region95: #{tpu_custom_call.1} parent=31 // pred_region
          %419 = sst [smem:[#allocation12]] [#allocation41]
          %420 = sst [smem:[#allocation13]] [#allocation40]
        $region96: #{tpu_custom_call.1} parent=31 // pred_fallthru
          _
        %422 = shalt.err (0)
        %s424 = sshll.u32 %s416, 4
        %s425 = int_to_ptr.vmem [resolvable:$true] %s424
        %427 = dma.hbm_to_vmem [thread:$0]  %s415, 16, %s425, %s320
        %s428 = sadd.s32 %s188, 15
        %s429 = sld [smem:[#allocation5 + %s428]]
        %s430 = smul.addr %s429, 16
        %s431 = scalar_lea.hbm %s1, %s430
        %s432 = scalar_lea.vmem [#allocation2], 15
        // Predicated region
        $region97: #{tpu_custom_call.1} parent=31 // pred_check
          _
        $region98: #{tpu_custom_call.1} parent=31 // pred_check_branch
          %434 = sbr.rel target = $region100
        $region99: #{tpu_custom_call.1} parent=31 // pred_region
          %435 = sst [smem:[#allocation12]] [#allocation43]
          %436 = sst [smem:[#allocation13]] [#allocation42]
        $region100: #{tpu_custom_call.1} parent=31 // pred_fallthru
          _
        %438 = shalt.err (0)
        %s440 = sshll.u32 %s432, 4
        %s441 = int_to_ptr.vmem [resolvable:$true] %s440
        %443 = dma.hbm_to_vmem [thread:$0]  %s431, 16, %s441, %s320
        %s444 = sadd.s32 %s188, 16
        %s445 = sld [smem:[#allocation5 + %s444]]
        %s446 = smul.addr %s445, 16
        %s447 = scalar_lea.hbm %s1, %s446
        %s448 = scalar_lea.vmem [#allocation2], 16
        %s449 = scalar_lea.sflag [#allocation3], 2
        // Predicated region
        $region101: #{tpu_custom_call.1} parent=31 // pred_check
          _
        $region102: #{tpu_custom_call.1} parent=31 // pred_check_branch
          %451 = sbr.rel target = $region104
        $region103: #{tpu_custom_call.1} parent=31 // pred_region
          %452 = sst [smem:[#allocation12]] [#allocation45]
          %453 = sst [smem:[#allocation13]] [#allocation44]
        $region104: #{tpu_custom_call.1} parent=31 // pred_fallthru
          _
        %455 = shalt.err (0)
        %s457 = sshll.u32 %s448, 4
        %s458 = int_to_ptr.vmem [resolvable:$true] %s457
        %460 = dma.hbm_to_vmem [thread:$0]  %s447, 16, %s458, %s449
        %s461 = sadd.s32 %s188, 17
        %s462 = sld [smem:[#allocation5 + %s461]]
        %s463 = smul.addr %s462, 16
        %s464 = scalar_lea.hbm %s1, %s463
        %s465 = scalar_lea.vmem [#allocation2], 17
        // Predicated region
        $region105: #{tpu_custom_call.1} parent=31 // pred_check
          _
        $region106: #{tpu_custom_call.1} parent=31 // pred_check_branch
          %467 = sbr.rel target = $region108
        $region107: #{tpu_custom_call.1} parent=31 // pred_region
          %468 = sst [smem:[#allocation12]] [#allocation47]
          %469 = sst [smem:[#allocation13]] [#allocation46]
        $region108: #{tpu_custom_call.1} parent=31 // pred_fallthru
          _
        %471 = shalt.err (0)
        %s473 = sshll.u32 %s465, 4
        %s474 = int_to_ptr.vmem [resolvable:$true] %s473
        %476 = dma.hbm_to_vmem [thread:$0]  %s464, 16, %s474, %s449
        %s477 = sadd.s32 %s188, 18
        %s478 = sld [smem:[#allocation5 + %s477]]
        %s479 = smul.addr %s478, 16
        %s480 = scalar_lea.hbm %s1, %s479
        %s481 = scalar_lea.vmem [#allocation2], 18
        // Predicated region
        $region109: #{tpu_custom_call.1} parent=31 // pred_check
          _
        $region110: #{tpu_custom_call.1} parent=31 // pred_check_branch
          %483 = sbr.rel target = $region112
        $region111: #{tpu_custom_call.1} parent=31 // pred_region
          %484 = sst [smem:[#allocation12]] [#allocation49]
          %485 = sst [smem:[#allocation13]] [#allocation48]
        $region112: #{tpu_custom_call.1} parent=31 // pred_fallthru
          _
        %487 = shalt.err (0)
        %s489 = sshll.u32 %s481, 4
        %s490 = int_to_ptr.vmem [resolvable:$true] %s489
        %492 = dma.hbm_to_vmem [thread:$0]  %s480, 16, %s490, %s449
        %s493 = sadd.s32 %s188, 19
        %s494 = sld [smem:[#allocation5 + %s493]]
        %s495 = smul.addr %s494, 16
        %s496 = scalar_lea.hbm %s1, %s495
        %s497 = scalar_lea.vmem [#allocation2], 19
        // Predicated region
        $region113: #{tpu_custom_call.1} parent=31 // pred_check
          _
        $region114: #{tpu_custom_call.1} parent=31 // pred_check_branch
          %499 = sbr.rel target = $region116
        $region115: #{tpu_custom_call.1} parent=31 // pred_region
          %500 = sst [smem:[#allocation12]] [#allocation51]
          %501 = sst [smem:[#allocation13]] [#allocation50]
        $region116: #{tpu_custom_call.1} parent=31 // pred_fallthru
          _
        %503 = shalt.err (0)
        %s505 = sshll.u32 %s497, 4
        %s506 = int_to_ptr.vmem [resolvable:$true] %s505
        %508 = dma.hbm_to_vmem [thread:$0]  %s496, 16, %s506, %s449
        %s509 = sadd.s32 %s188, 20
        %s510 = sld [smem:[#allocation5 + %s509]]
        %s511 = smul.addr %s510, 16
        %s512 = scalar_lea.hbm %s1, %s511
        %s513 = scalar_lea.vmem [#allocation2], 20
        // Predicated region
        $region117: #{tpu_custom_call.1} parent=31 // pred_check
          _
        $region118: #{tpu_custom_call.1} parent=31 // pred_check_branch
          %515 = sbr.rel target = $region120
        $region119: #{tpu_custom_call.1} parent=31 // pred_region
          %516 = sst [smem:[#allocation12]] [#allocation53]
          %517 = sst [smem:[#allocation13]] [#allocation52]
        $region120: #{tpu_custom_call.1} parent=31 // pred_fallthru
          _
        %519 = shalt.err (0)
        %s521 = sshll.u32 %s513, 4
        %s522 = int_to_ptr.vmem [resolvable:$true] %s521
        %524 = dma.hbm_to_vmem [thread:$0]  %s512, 16, %s522, %s449
        %s525 = sadd.s32 %s188, 21
        %s526 = sld [smem:[#allocation5 + %s525]]
        %s527 = smul.addr %s526, 16
        %s528 = scalar_lea.hbm %s1, %s527
        %s529 = scalar_lea.vmem [#allocation2], 21
        // Predicated region
        $region121: #{tpu_custom_call.1} parent=31 // pred_check
          _
        $region122: #{tpu_custom_call.1} parent=31 // pred_check_branch
          %531 = sbr.rel target = $region124
        $region123: #{tpu_custom_call.1} parent=31 // pred_region
          %532 = sst [smem:[#allocation12]] [#allocation55]
          %533 = sst [smem:[#allocation13]] [#allocation54]
        $region124: #{tpu_custom_call.1} parent=31 // pred_fallthru
          _
        %535 = shalt.err (0)
        %s537 = sshll.u32 %s529, 4
        %s538 = int_to_ptr.vmem [resolvable:$true] %s537
        %540 = dma.hbm_to_vmem [thread:$0]  %s528, 16, %s538, %s449
        %s541 = sadd.s32 %s188, 22
        %s542 = sld [smem:[#allocation5 + %s541]]
        %s543 = smul.addr %s542, 16
        %s544 = scalar_lea.hbm %s1, %s543
        %s545 = scalar_lea.vmem [#allocation2], 22
        // Predicated region
        $region125: #{tpu_custom_call.1} parent=31 // pred_check
          _
        $region126: #{tpu_custom_call.1} parent=31 // pred_check_branch
          %547 = sbr.rel target = $region128
        $region127: #{tpu_custom_call.1} parent=31 // pred_region
          %548 = sst [smem:[#allocation12]] [#allocation57]
          %549 = sst [smem:[#allocation13]] [#allocation56]
        $region128: #{tpu_custom_call.1} parent=31 // pred_fallthru
          _
        %551 = shalt.err (0)
        %s553 = sshll.u32 %s545, 4
        %s554 = int_to_ptr.vmem [resolvable:$true] %s553
        %556 = dma.hbm_to_vmem [thread:$0]  %s544, 16, %s554, %s449
        %s557 = sadd.s32 %s188, 23
        %s558 = sld [smem:[#allocation5 + %s557]]
        %s559 = smul.addr %s558, 16
        %s560 = scalar_lea.hbm %s1, %s559
        %s561 = scalar_lea.vmem [#allocation2], 23
        // Predicated region
        $region129: #{tpu_custom_call.1} parent=31 // pred_check
          _
        $region130: #{tpu_custom_call.1} parent=31 // pred_check_branch
          %563 = sbr.rel target = $region132
        $region131: #{tpu_custom_call.1} parent=31 // pred_region
          %564 = sst [smem:[#allocation12]] [#allocation59]
          %565 = sst [smem:[#allocation13]] [#allocation58]
        $region132: #{tpu_custom_call.1} parent=31 // pred_fallthru
          _
        %567 = shalt.err (0)
        %s569 = sshll.u32 %s561, 4
        %s570 = int_to_ptr.vmem [resolvable:$true] %s569
        %572 = dma.hbm_to_vmem [thread:$0]  %s560, 16, %s570, %s449
        %s573 = sadd.s32 %s188, 24
        %s574 = sld [smem:[#allocation5 + %s573]]
        %s575 = smul.addr %s574, 16
        %s576 = scalar_lea.hbm %s1, %s575
        %s577 = scalar_lea.vmem [#allocation2], 24
        %s578 = scalar_lea.sflag [#allocation3], 3
        // Predicated region
        $region133: #{tpu_custom_call.1} parent=31 // pred_check
          _
        $region134: #{tpu_custom_call.1} parent=31 // pred_check_branch
          %580 = sbr.rel target = $region136
        $region135: #{tpu_custom_call.1} parent=31 // pred_region
          %581 = sst [smem:[#allocation12]] [#allocation61]
          %582 = sst [smem:[#allocation13]] [#allocation60]
        $region136: #{tpu_custom_call.1} parent=31 // pred_fallthru
          _
        %584 = shalt.err (0)
        %s586 = sshll.u32 %s577, 4
        %s587 = int_to_ptr.vmem [resolvable:$true] %s586
        %589 = dma.hbm_to_vmem [thread:$0]  %s576, 16, %s587, %s578
        %s590 = sadd.s32 %s188, 25
        %s591 = sld [smem:[#allocation5 + %s590]]
        %s592 = smul.addr %s591, 16
        %s593 = scalar_lea.hbm %s1, %s592
        %s594 = scalar_lea.vmem [#allocation2], 25
        // Predicated region
        $region137: #{tpu_custom_call.1} parent=31 // pred_check
          _
        $region138: #{tpu_custom_call.1} parent=31 // pred_check_branch
          %596 = sbr.rel target = $region140
        $region139: #{tpu_custom_call.1} parent=31 // pred_region
          %597 = sst [smem:[#allocation12]] [#allocation63]
          %598 = sst [smem:[#allocation13]] [#allocation62]
        $region140: #{tpu_custom_call.1} parent=31 // pred_fallthru
          _
        %600 = shalt.err (0)
        %s602 = sshll.u32 %s594, 4
        %s603 = int_to_ptr.vmem [resolvable:$true] %s602
        %605 = dma.hbm_to_vmem [thread:$0]  %s593, 16, %s603, %s578
        %s606 = sadd.s32 %s188, 26
        %s607 = sld [smem:[#allocation5 + %s606]]
        %s608 = smul.addr %s607, 16
        %s609 = scalar_lea.hbm %s1, %s608
        %s610 = scalar_lea.vmem [#allocation2], 26
        // Predicated region
        $region141: #{tpu_custom_call.1} parent=31 // pred_check
          _
        $region142: #{tpu_custom_call.1} parent=31 // pred_check_branch
          %612 = sbr.rel target = $region144
        $region143: #{tpu_custom_call.1} parent=31 // pred_region
          %613 = sst [smem:[#allocation12]] [#allocation65]
          %614 = sst [smem:[#allocation13]] [#allocation64]
        $region144: #{tpu_custom_call.1} parent=31 // pred_fallthru
          _
        %616 = shalt.err (0)
        %s618 = sshll.u32 %s610, 4
        %s619 = int_to_ptr.vmem [resolvable:$true] %s618
        %621 = dma.hbm_to_vmem [thread:$0]  %s609, 16, %s619, %s578
        %s622 = sadd.s32 %s188, 27
        %s623 = sld [smem:[#allocation5 + %s622]]
        %s624 = smul.addr %s623, 16
        %s625 = scalar_lea.hbm %s1, %s624
        %s626 = scalar_lea.vmem [#allocation2], 27
        // Predicated region
        $region145: #{tpu_custom_call.1} parent=31 // pred_check
          _
        $region146: #{tpu_custom_call.1} parent=31 // pred_check_branch
          %628 = sbr.rel target = $region148
        $region147: #{tpu_custom_call.1} parent=31 // pred_region
          %629 = sst [smem:[#allocation12]] [#allocation67]
          %630 = sst [smem:[#allocation13]] [#allocation66]
        $region148: #{tpu_custom_call.1} parent=31 // pred_fallthru
          _
        %632 = shalt.err (0)
        %s634 = sshll.u32 %s626, 4
        %s635 = int_to_ptr.vmem [resolvable:$true] %s634
        %637 = dma.hbm_to_vmem [thread:$0]  %s625, 16, %s635, %s578
        %s638 = sadd.s32 %s188, 28
        %s639 = sld [smem:[#allocation5 + %s638]]
        %s640 = smul.addr %s639, 16
        %s641 = scalar_lea.hbm %s1, %s640
        %s642 = scalar_lea.vmem [#allocation2], 28
        // Predicated region
        $region149: #{tpu_custom_call.1} parent=31 // pred_check
          _
        $region150: #{tpu_custom_call.1} parent=31 // pred_check_branch
          %644 = sbr.rel target = $region152
        $region151: #{tpu_custom_call.1} parent=31 // pred_region
          %645 = sst [smem:[#allocation12]] [#allocation69]
          %646 = sst [smem:[#allocation13]] [#allocation68]
        $region152: #{tpu_custom_call.1} parent=31 // pred_fallthru
          _
        %648 = shalt.err (0)
        %s650 = sshll.u32 %s642, 4
        %s651 = int_to_ptr.vmem [resolvable:$true] %s650
        %653 = dma.hbm_to_vmem [thread:$0]  %s641, 16, %s651, %s578
        %s654 = sadd.s32 %s188, 29
        %s655 = sld [smem:[#allocation5 + %s654]]
        %s656 = smul.addr %s655, 16
        %s657 = scalar_lea.hbm %s1, %s656
        %s658 = scalar_lea.vmem [#allocation2], 29
        // Predicated region
        $region153: #{tpu_custom_call.1} parent=31 // pred_check
          _
        $region154: #{tpu_custom_call.1} parent=31 // pred_check_branch
          %660 = sbr.rel target = $region156
        $region155: #{tpu_custom_call.1} parent=31 // pred_region
          %661 = sst [smem:[#allocation12]] [#allocation71]
          %662 = sst [smem:[#allocation13]] [#allocation70]
        $region156: #{tpu_custom_call.1} parent=31 // pred_fallthru
          _
        %664 = shalt.err (0)
        %s666 = sshll.u32 %s658, 4
        %s667 = int_to_ptr.vmem [resolvable:$true] %s666
        %669 = dma.hbm_to_vmem [thread:$0]  %s657, 16, %s667, %s578
        %s670 = sadd.s32 %s188, 30
        %s671 = sld [smem:[#allocation5 + %s670]]
        %s672 = smul.addr %s671, 16
        %s673 = scalar_lea.hbm %s1, %s672
        %s674 = scalar_lea.vmem [#allocation2], 30
        // Predicated region
        $region157: #{tpu_custom_call.1} parent=31 // pred_check
          _
        $region158: #{tpu_custom_call.1} parent=31 // pred_check_branch
          %676 = sbr.rel target = $region160
        $region159: #{tpu_custom_call.1} parent=31 // pred_region
          %677 = sst [smem:[#allocation12]] [#allocation73]
          %678 = sst [smem:[#allocation13]] [#allocation72]
        $region160: #{tpu_custom_call.1} parent=31 // pred_fallthru
          _
        %680 = shalt.err (0)
        %s682 = sshll.u32 %s674, 4
        %s683 = int_to_ptr.vmem [resolvable:$true] %s682
        %685 = dma.hbm_to_vmem [thread:$0]  %s673, 16, %s683, %s578
        %s686 = sadd.s32 %s188, 31
        %s687 = sld [smem:[#allocation5 + %s686]]
        %s688 = smul.addr %s687, 16
        %s689 = scalar_lea.hbm %s1, %s688
        %s690 = scalar_lea.vmem [#allocation2], 31
        // Predicated region
        $region161: #{tpu_custom_call.1} parent=31 // pred_check
          _
        $region162: #{tpu_custom_call.1} parent=31 // pred_check_branch
          %692 = sbr.rel target = $region164
        $region163: #{tpu_custom_call.1} parent=31 // pred_region
          %693 = sst [smem:[#allocation12]] [#allocation75]
          %694 = sst [smem:[#allocation13]] [#allocation74]
        $region164: #{tpu_custom_call.1} parent=31 // pred_fallthru
          _
        %696 = shalt.err (0)
        %s698 = sshll.u32 %s690, 4
        %s699 = int_to_ptr.vmem [resolvable:$true] %s698
        %701 = dma.hbm_to_vmem [thread:$0]  %s689, 16, %s699, %s578
        %v702 = vld [vmem:[%s3] sm:$0x1]
        %v703 = vld [vmem:[%s4] sm:$0x1]
        %s704 = smul.u32 8, 1
        %s705 = sshll.u32 %s704, 4
        %706 = dma.done [#allocation3], %s705
        %v707 = vld [vmem:[#allocation2] sm:$0xff]
        %s708 = scalar_lea.vmem [#allocation6], %s187
        %v709 = vld [vmem:[%s708] sm:$0xff]
        %v710 = vadd.f32 %v707, %v709
        %711 = vadd.xlane.f32.xlu0 %v710
        %v712 = vpop.xlane.xlu0 %711
        %v713 = vrcp.pop 128.0
        %v714 = vmul.f32 %v712, %v713
        %v715 = vsub.f32 %v710, %v714
        %v716 = vmul.f32 %v715, %v715
        %717 = vadd.xlane.f32.xlu0 %v716
        %v718 = vpop.xlane.xlu0 %717
        %v719 = vmul.f32 %v718, %v713
        %v720 = vadd.f32 %v719, 1e-12
        %v721 = vrsqrt.pop %v720
        %v722 = vmul.f32 %v715, %v721
        %v724 = vlaneseq
        %v725 = vshrl.u32 %v724, 7
        %v726 = vsub.s32 0, %v725
        %v727 = vrot.slane %v702, %v726
        %v729 = vmul.f32 %v722, %v727
        %v731 = vlaneseq
        %v732 = vshrl.u32 %v731, 7
        %v733 = vsub.s32 0, %v732
        %v734 = vrot.slane %v703, %v733
        %v736 = vadd.f32 %v729, %v734
        %737 = vst [vmem:[%s183] sm:$0xff] %v736
        %s738 = sshll.u32 %s704, 4
        %739 = dma.done %s320, %s738
        %v740 = vld [vmem:[%s319] sm:$0xff]
        %s741 = sadd.s32 %s187, 8
        %s742 = scalar_lea.vmem [#allocation6], %s741
        %v743 = vld [vmem:[%s742] sm:$0xff]
        %v744 = vadd.f32 %v740, %v743
        %745 = vadd.xlane.f32.xlu0 %v744
        %v746 = vpop.xlane.xlu0 %745
        %v747 = vmul.f32 %v746, %v713
        %v748 = vsub.f32 %v744, %v747
        %v749 = vmul.f32 %v748, %v748
        %750 = vadd.xlane.f32.xlu0 %v749
        %v751 = vpop.xlane.xlu0 %750
        %v752 = vmul.f32 %v751, %v713
        %v753 = vadd.f32 %v752, 1e-12
        %v754 = vrsqrt.pop %v753
        %v755 = vmul.f32 %v748, %v754
        %v756 = vmul.f32 %v755, %v727
        %v757 = vadd.f32 %v756, %v734
        %758 = vst [vmem:[%s183 + $0x8] sm:$0xff] %v757
        %s759 = sshll.u32 %s704, 4
        %760 = dma.done %s449, %s759
        %v761 = vld [vmem:[%s448] sm:$0xff]
        %s762 = sadd.s32 %s187, 16
        %s763 = scalar_lea.vmem [#allocation6], %s762
        %v764 = vld [vmem:[%s763] sm:$0xff]
        %v765 = vadd.f32 %v761, %v764
        %766 = vadd.xlane.f32.xlu0 %v765
        %v767 = vpop.xlane.xlu0 %766
        %v768 = vmul.f32 %v767, %v713
        %v769 = vsub.f32 %v765, %v768
        %v770 = vmul.f32 %v769, %v769
        %771 = vadd.xlane.f32.xlu0 %v770
        %v772 = vpop.xlane.xlu0 %771
        %v773 = vmul.f32 %v772, %v713
        %v774 = vadd.f32 %v773, 1e-12
        %v775 = vrsqrt.pop %v774
        %v776 = vmul.f32 %v769, %v775
        %v777 = vmul.f32 %v776, %v727
        %v778 = vadd.f32 %v777, %v734
        %779 = vst [vmem:[%s183 + $0x10] sm:$0xff] %v778
        %s780 = sshll.u32 %s704, 4
        %781 = dma.done %s578, %s780
        %v782 = vld [vmem:[%s577] sm:$0xff]
        %s783 = sadd.s32 %s187, 24
        %s784 = scalar_lea.vmem [#allocation6], %s783
        %v785 = vld [vmem:[%s784] sm:$0xff]
        %v786 = vadd.f32 %v782, %v785
        %787 = vadd.xlane.f32.xlu0 %v786
        %v788 = vpop.xlane.xlu0 %787
        %v789 = vmul.f32 %v788, %v713
        %v790 = vsub.f32 %v786, %v789
        %v791 = vmul.f32 %v790, %v790
        %792 = vadd.xlane.f32.xlu0 %v791
        %v793 = vpop.xlane.xlu0 %792
        %v794 = vmul.f32 %v793, %v713
        %v795 = vadd.f32 %v794, 1e-12
        %v796 = vrsqrt.pop %v795
        %v797 = vmul.f32 %v790, %v796
        %v798 = vmul.f32 %v797, %v727
        %v799 = vadd.f32 %v798, %v734
        %800 = vst [vmem:[%s183 + $0x18] sm:$0xff] %v799
        %s801 = sand.u32 %s109, 1
        %s802 = scalar_lea.sflag [#allocation8], %s801
        %s803 = sand.u32 %s109, 1
        %s804 = smul.addr %s803, 32
        %s805 = scalar_lea.vmem [#allocation9], %s804
        // Predicated region
        $region165: #{tpu_custom_call.1} parent=31 // pred_check
          %p806 = pneg %p119
        $region166: #{tpu_custom_call.1} parent=31 // pred_check_branch
          %808 = sbr.rel (%p806) target = $region168
        $region167: #{tpu_custom_call.1} parent=31 // pred_region
          %s809 = sadd.s32 %s28, %s29
          %s810 = smul.u32 4, %s809
          %s812 = ssub.s32 512, 512
          %813 = vsyncadd %s802, %s812
          %s814 = smul.addr %s810, 128
          %s815 = scalar_lea.hbm %s5, %s814
          %s816 = sshll.u32 %s805, 4
          %s817 = int_to_ptr.vmem [resolvable:$true] %s816
          %822 = dma.vmem_to_hbm [thread:$0]  %s817, 512, %s815, %s802, 128, 128, 8
        $region168: #{tpu_custom_call.1} parent=31 // pred_fallthru
          _
      $region32: #{tpu_custom_call.1} parent=5 // pred_fallthru
        _
      %p823 = scmp.le.s32.totalorder 2, %s19
      // Predicated region
      $region169: #{tpu_custom_call.1} parent=5 // pred_check
        %p824 = pneg %p823
      $region170: #{tpu_custom_call.1} parent=5 // pred_check_branch
        %826 = sbr.rel (%p824) target = $region172
      $region171: #{tpu_custom_call.1} parent=5 // pred_region
        %s827 = ssub.s32 %s19, 2
        // Predicated region
        $region173: #{tpu_custom_call.1} parent=171 // pred_check
          %p828 = pneg %p125
        $region174: #{tpu_custom_call.1} parent=171 // pred_check_branch
          %830 = sbr.rel (%p828) target = $region176
        $region175: #{tpu_custom_call.1} parent=171 // pred_region
          %s831 = sand.u32 %s110, 1
          %s832 = scalar_lea.sflag [#allocation8], %s831
          %s833 = sand.u32 %s110, 1
          %s834 = smul.addr %s833, 32
          %s835 = scalar_lea.vmem [#allocation9], %s834
          %836 = dma.done %s832, 512
        $region176: #{tpu_custom_call.1} parent=171 // pred_fallthru
          _
      $region172: #{tpu_custom_call.1} parent=5 // pred_fallthru
        _
    $region6: #{tpu_custom_call.1} parent=1 // loop_footer
      %s23 = sadd.s32 1, %s19
    $region7: #{tpu_custom_call.1} parent=1 // loop_footer_branch
      %18 = sbr.rel target = $region3
    $region8: #{tpu_custom_call.1} parent=1 // loop_exit
      _
    %837 = vsyncpa [#allocation7], 1
    %s838 = scalar_lea.sflag [#allocation7], 1
    %839 = vsyncpa %s838, 1
    %840 = vsyncpa [#allocation8], 1
    %s841 = scalar_lea.sflag [#allocation8], 1
    %842 = vsyncpa %s841, 1
  %843 = vsyncmov [#allocation3]
  %s844 = vpop.sfrf %843
  %p845 = scmp.eq.s32.totalorder %s844, 0
  %p846 = pneg %p845
  %848 = shalt.err (%p846)
  %s849 = scalar_lea.sflag [#allocation3], 1
  %850 = vsyncmov %s849
  %s851 = vpop.sfrf %850
  %p852 = scmp.eq.s32.totalorder %s851, 0
  %p853 = pneg %p852
  %855 = shalt.err (%p853)
  %s856 = scalar_lea.sflag [#allocation3], 2
  %857 = vsyncmov %s856
  %s858 = vpop.sfrf %857
  %p859 = scmp.eq.s32.totalorder %s858, 0
  %p860 = pneg %p859
  %862 = shalt.err (%p860)
  %s863 = scalar_lea.sflag [#allocation3], 3
  %864 = vsyncmov %s863
  %s865 = vpop.sfrf %864
  %p866 = scmp.eq.s32.totalorder %s865, 0
  %p867 = pneg %p866
  %869 = shalt.err (%p867)

</llo_original>
